<compile_context>
chip_gen: v5e
topology: v5e:2x2
jax: 0.10.0
libtpu: 0.0.40
codegen_flags: <defaults>
</compile_context>

<pallas_src>
import functools
import math

import jax
import jax.numpy as jnp
from jax.experimental import pallas as pl
from jax.experimental.pallas import tpu as pltpu


# ----------------------------------------------------------------------------
# Fused kernel: one grid step = (one batch tile, one encoder layer)
# ----------------------------------------------------------------------------
def _cx_encoder_kernel(q_ref, k_ref, qpos_ref, amask_ref, kpm_ref,
                       wq_ref, wk_ref, wv_ref, bq_ref, bk_ref, bv_ref,
                       wo_ref, bo_ref, w1_ref, b1_ref, w2_ref, b2_ref,
                       g1_ref, be1_ref, g2_ref, be2_ref,
                       *outs_and_scratch, nhead, collect_attn, matmul_dtype):
    if collect_attn:
        out_ref, attn_ref, act_ref = outs_and_scratch
    else:
        (out_ref, act_ref), attn_ref = outs_and_scratch, None

    layer = pl.program_id(1)

    @pl.when(layer == 0)
    def _():
        # Layer axis is innermost + "arbitrary": reload the query activation
        # at the start of each batch tile's layer sweep.
        act_ref[...] = q_ref[...]

    bt, Lq, D = q_ref.shape
    Lk = k_ref.shape[1]
    hd = D // nhead
    f32 = jnp.float32
    md = matmul_dtype

    src3 = act_ref[...]                               # (bt, Lq, D) f32, carried
    q_all = src3 + qpos_ref[...]                      # with_pos_embed(query)
    k_all = k_ref[...]                                # k_pos pre-added in wrapper
    mask3 = amask_ref[...][None] + kpm_ref[...]       # (bt, Lq, Lk) additive

    def mm(a, b, bias=None):                          # MXU matmul, f32 accumulate
        r = jnp.dot(a.astype(md), b, preferred_element_type=f32)
        return r if bias is None else r + bias

    # ---- full-width Q/K/V projections on flattened rows (lane-dense) ----
    q2d = q_all.reshape(bt * Lq, D)
    k2d = k_all.reshape(bt * Lk, D)
    q_proj = mm(q2d, wq_ref[...], bq_ref[...]).reshape(bt, Lq, D)   # scale folded in
    k_proj = mm(k2d, wk_ref[...], bk_ref[...]).reshape(bt, Lk, D)
    v_proj = mm(k2d, wv_ref[...], bv_ref[...]).reshape(bt, Lk, D)

    # ---- per-head scores / softmax / AV (batched over the batch tile) ----
    ctx_heads = []
    wei = jnp.zeros((bt, Lq, Lk), f32) if collect_attn else None
    for h in range(nhead):                            # small static head loop
        sl = slice(h * hd, (h + 1) * hd)
        qh = q_proj[:, :, sl].astype(md)              # (bt, Lq, hd)
        kh = k_proj[:, :, sl].astype(md)              # (bt, Lk, hd)
        vh = v_proj[:, :, sl].astype(md)              # (bt, Lk, hd)
        s = jnp.einsum("bqd,bkd->bqk", qh, kh,
                       preferred_element_type=f32) + mask3
        s = s - jnp.max(s, axis=-1, keepdims=True)
        e = jnp.exp(s)
        a = e * pl.reciprocal(jnp.sum(e, axis=-1, keepdims=True), approx=True)
        if collect_attn:
            wei = wei + a
        ctx_heads.append(jnp.einsum("bqk,bkd->bqd", a.astype(md), vh,
                                    preferred_element_type=f32))
    if collect_attn:
        attn_ref[...] = (wei * (1.0 / nhead)).astype(attn_ref.dtype)

    # Head concat along lanes -> ONE full-D output projection.
    ctx = jnp.concatenate(ctx_heads, axis=-1).reshape(bt * Lq, D)
    attn_out = mm(ctx, wo_ref[...], bo_ref[...])      # (bt*Lq, D)

    # ---- residual + norm1, FFN, residual + norm2 on the flat (bt*Lq, D) ----
    def layer_norm(v, g, b):
        mu = jnp.mean(v, axis=-1, keepdims=True)
        c = v - mu
        var = jnp.mean(c * c, axis=-1, keepdims=True)
        return c * jax.lax.rsqrt(var + 1e-5) * g + b

    src2d = src3.reshape(bt * Lq, D)
    x = layer_norm(src2d + attn_out, g1_ref[...], be1_ref[...])
    h1 = jnp.maximum(mm(x, w1_ref[...], b1_ref[...]), 0.0)   # relu(linear1)
    ff = mm(h1, w2_ref[...], b2_ref[...])                    # linear2
    y = layer_norm(x + ff, g2_ref[...], be2_ref[...]).reshape(bt, Lq, D)

    act_ref[...] = y                                  # carried to next layer
    out_ref[...] = y.astype(out_ref.dtype)            # per-layer output


# ----------------------------------------------------------------------------
# Parameter preparation: PyTorch layout -> kernel layout, stacked over layers
# ----------------------------------------------------------------------------
_PARAM_ORDER = ("wq", "wk", "wv", "bq", "bk", "bv", "wo", "bo",
                "w1", "b1", "w2", "b2", "g1", "be1", "g2", "be2")


def prepare_encoder_params(layers_params, nhead, matmul_dtype=jnp.bfloat16):
    def per_layer(p):
        D = p["out_proj_w"].shape[0]
        hd = D // nhead
        scale = 1.0 / math.sqrt(hd)
        f32 = jnp.float32
        return dict(
            # Full-width projection weights; 1/sqrt(hd) folded into Wq/bq.
            wq=(p["in_proj_w"][:D].T * scale).astype(matmul_dtype),
            wk=p["in_proj_w"][D:2 * D].T.astype(matmul_dtype),
            wv=p["in_proj_w"][2 * D:].T.astype(matmul_dtype),
            bq=(p["in_proj_b"][:D] * scale)[None, :].astype(f32),
            bk=p["in_proj_b"][D:2 * D][None, :].astype(f32),
            bv=p["in_proj_b"][2 * D:][None, :].astype(f32),
            wo=p["out_proj_w"].T.astype(matmul_dtype),
            bo=p["out_proj_b"][None, :].astype(f32),
            w1=p["lin1_w"].T.astype(matmul_dtype), b1=p["lin1_b"][None, :].astype(f32),
            w2=p["lin2_w"].T.astype(matmul_dtype), b2=p["lin2_b"][None, :].astype(f32),
            g1=p["ln1_g"][None, :].astype(f32), be1=p["ln1_b"][None, :].astype(f32),
            g2=p["ln2_g"][None, :].astype(f32), be2=p["ln2_b"][None, :].astype(f32),
        )

    per = [per_layer(p) for p in layers_params]
    return {k: jnp.stack([d[k] for d in per], axis=0) for k in _PARAM_ORDER}


def _default_batch_tiles(B):
    """>=2 parallel batch tiles only on multi-TensorCore chips."""
    try:
        kind = jax.devices()[0].device_kind.lower()
        multi_tc = any(t in kind for t in ("v4", "v5p", "v7"))
    except Exception:
        multi_tc = False
    return 2 if (multi_tc and B >= 2 and B % 2 == 0) else 1


# ----------------------------------------------------------------------------
# Full CXEncoder forward (matches CXTransformerEncoder, normalize_before=False)
# ----------------------------------------------------------------------------
def cx_encoder_forward(query, key, attn_mask, key_padding_mask,
                       q_pos_embed, k_pos_embed, layers_params, nhead,
                       *, collect_attn=True, matmul_dtype=jnp.bfloat16,
                       batch_tiles=None):
    # query/key/pos: (L, B, D) seq-first (PyTorch MHA convention)
    Lq, B, D = query.shape
    Lk = key.shape[0]
    NL = len(layers_params)
    f32 = jnp.float32

    q_bld = jnp.transpose(query, (1, 0, 2)).astype(f32)
    qpos_bld = jnp.transpose(q_pos_embed, (1, 0, 2)).astype(f32)
    # k + k_pos is layer-invariant: fold it outside the kernel.
    k_bld = jnp.transpose(key + k_pos_embed, (1, 0, 2)).astype(f32)

    am = jnp.zeros((Lq, Lk), f32) if attn_mask is None else attn_mask.astype(f32)
    if key_padding_mask is None:
        kpm_add = jnp.zeros((B, 1, Lk), f32)
    else:
        # -1e9 (finite) instead of -inf: fully masked key rows degrade to a
        # near-uniform distribution instead of NaN (intentional deviation).
        kpm_add = jnp.where(key_padding_mask, -1e9, 0.0).astype(f32)[:, None, :]

    stacked = prepare_encoder_params(layers_params, nhead, matmul_dtype)

    if batch_tiles is None:
        batch_tiles = _default_batch_tiles(B)
    assert B % batch_tiles == 0
    bt = B // batch_tiles

    def _layer_spec(arr):        # stacked per-layer params: squeeze the layer axis
        nd = arr.ndim
        return pl.BlockSpec((None,) + arr.shape[1:],
                            lambda b, l, _nd=nd: (l,) + (0,) * (_nd - 1))

    in_specs = [
        pl.BlockSpec((bt, Lq, D), lambda b, l: (b, 0, 0)),    # query
        pl.BlockSpec((bt, Lk, D), lambda b, l: (b, 0, 0)),    # key (+k_pos)
        pl.BlockSpec((bt, Lq, D), lambda b, l: (b, 0, 0)),    # q_pos
        pl.BlockSpec((Lq, Lk), lambda b, l: (0, 0)),          # shared attn_mask
        pl.BlockSpec((bt, 1, Lk), lambda b, l: (b, 0, 0)),    # key-padding additive
    ] + [_layer_spec(stacked[name]) for name in _PARAM_ORDER]

    out_spec_y = pl.BlockSpec((None, bt, Lq, D), lambda b, l: (l, b, 0, 0))
    out_shape_y = jax.ShapeDtypeStruct((NL, B, Lq, D), f32)
    if collect_attn:
        out_specs = (out_spec_y,
                     pl.BlockSpec((None, bt, Lq, Lk), lambda b, l: (l, b, 0, 0)))
        out_shape = (out_shape_y, jax.ShapeDtypeStruct((NL, B, Lq, Lk), f32))
    else:
        out_specs = out_spec_y
        out_shape = out_shape_y

    # --- explicit VMEM budget -> vmem_limit_bytes ---------------------------
    per_layer_w_bytes = sum(int(stacked[n][0].size) * stacked[n].dtype.itemsize
                            for n in _PARAM_ORDER)
    io_bytes = 4 * (2 * bt * Lq * D + bt * Lk * D + Lq * Lk + bt * Lk)
    out_bytes = 4 * bt * Lq * D + (4 * bt * Lq * Lk if collect_attn else 0)
    scratch_bytes = 4 * bt * Lq * D
    est = 2 * (per_layer_w_bytes + io_bytes + out_bytes) + scratch_bytes
    vmem_limit = int(min(64 * 2 ** 20, max(int(est * 1.5) + (2 << 20), 32 * 2 ** 20)))

    kernel = functools.partial(_cx_encoder_kernel,
                               nhead=nhead,
                               collect_attn=collect_attn,
                               matmul_dtype=matmul_dtype)
    result = pl.pallas_call(
        kernel,
        grid=(batch_tiles, NL),
        in_specs=in_specs,
        out_specs=out_specs,
        out_shape=out_shape,
        scratch_shapes=[pltpu.VMEM((bt, Lq, D), f32)],   # layer-resident activation
        compiler_params=pltpu.CompilerParams(
            dimension_semantics=("parallel", "arbitrary"),
            vmem_limit_bytes=vmem_limit),
    )(q_bld, k_bld, qpos_bld, am, kpm_add,
      *[stacked[name] for name in _PARAM_ORDER])

    if collect_attn:
        layer_out, layer_attn = result
    else:
        layer_out, layer_attn = result, None

    layer_out_lbd = jnp.transpose(layer_out, (0, 2, 1, 3))   # (NL, Lq, B, D)
    output_list = [layer_out_lbd[l] for l in range(NL)]
    attn_list = [layer_attn[l] for l in range(NL)] if collect_attn else None
    return output_list[-1], output_list, attn_list


# ----------------------------------------------------------------------------
# Deterministic parameter init (xavier_uniform for matrices, as in PyTorch)
# ----------------------------------------------------------------------------
def make_layer_params(key, d_model, dim_feedforward):
    D, Fd = d_model, dim_feedforward
    ks = jax.random.split(key, 6)

    def xavier(k, out_f, in_f):
        limit = math.sqrt(6.0 / (in_f + out_f))
        return jax.random.uniform(k, (out_f, in_f), jnp.float32, -limit, limit)

    return dict(
        in_proj_w=xavier(ks[0], 3 * D, D),
        in_proj_b=jnp.zeros((3 * D,), jnp.float32),
        out_proj_w=xavier(ks[1], D, D),
        out_proj_b=jnp.zeros((D,), jnp.float32),
        lin1_w=xavier(ks[2], Fd, D),
        lin1_b=0.01 * jax.random.normal(ks[3], (Fd,), jnp.float32),
        lin2_w=xavier(ks[4], D, Fd),
        lin2_b=0.01 * jax.random.normal(ks[5], (D,), jnp.float32),
        ln1_g=jnp.ones((D,), jnp.float32), ln1_b=jnp.zeros((D,), jnp.float32),
        ln2_g=jnp.ones((D,), jnp.float32), ln2_b=jnp.zeros((D,), jnp.float32),
    )


# ----------------------------------------------------------------------------
# Pure-JAX reference (mirrors the PyTorch forward_post semantics)
# ----------------------------------------------------------------------------
def _reference_forward(query, key, attn_mask, key_padding_mask,
                       q_pos, k_pos, layers_params, nhead):
    Lq, B, D = query.shape
    Lk = key.shape[0]
    hd = D // nhead
    scale = 1.0 / math.sqrt(hd)
    q_bld = jnp.transpose(query, (1, 0, 2))
    k_bld = jnp.transpose(key, (1, 0, 2))
    qp_bld = jnp.transpose(q_pos, (1, 0, 2))
    kp_bld = jnp.transpose(k_pos, (1, 0, 2))
    add_mask = attn_mask[None] + jnp.where(key_padding_mask[:, None, :], -1e9, 0.0)

    def ln(x, g, b):
        mu = x.mean(-1, keepdims=True)
        var = ((x - mu) ** 2).mean(-1, keepdims=True)
        return (x - mu) / jnp.sqrt(var + 1e-5) * g + b

    out = q_bld
    outs, attns = [], []
    for p in layers_params:
        q = out + qp_bld
        k = k_bld + kp_bld
        qp = (q @ p["in_proj_w"][:D].T + p["in_proj_b"][:D]) * scale
        kp = k @ p["in_proj_w"][D:2 * D].T + p["in_proj_b"][D:2 * D]
        vp = k @ p["in_proj_w"][2 * D:].T + p["in_proj_b"][2 * D:]
        qh = qp.reshape(B, Lq, nhead, hd).transpose(0, 2, 1, 3)
        kh = kp.reshape(B, Lk, nhead, hd).transpose(0, 2, 1, 3)
        vh = vp.reshape(B, Lk, nhead, hd).transpose(0, 2, 1, 3)
        s = jnp.einsum("bhqd,bhkd->bhqk", qh, kh) + add_mask[:, None]
        a = jax.nn.softmax(s, axis=-1)
        ctx = jnp.einsum("bhqk,bhkd->bhqd", a, vh).transpose(0, 2, 1, 3).reshape(B, Lq, D)
        attn_out = ctx @ p["out_proj_w"].T + p["out_proj_b"]
        src = ln(out + attn_out, p["ln1_g"], p["ln1_b"])
        ff = jnp.maximum(src @ p["lin1_w"].T + p["lin1_b"], 0.0) @ p["lin2_w"].T + p["lin2_b"]
        out = ln(src + ff, p["ln2_g"], p["ln2_b"])
        outs.append(jnp.transpose(out, (1, 0, 2)))
        attns.append(a.mean(axis=1))
    return outs[-1], outs, attns


if __name__ == "__main__":
    d_model, nhead, num_layers, dim_ff = 32, 4, 2, 64
    Lq, Lk, B = 8, 8, 2

    root = jax.random.PRNGKey(0)
    k_in, k_par = jax.random.split(root)
    ki = jax.random.split(k_in, 4)

    query = jax.random.normal(ki[0], (Lq, B, d_model), jnp.float32)
    key = jax.random.normal(ki[1], (Lk, B, d_model), jnp.float32)
    q_pos = jax.random.normal(ki[2], (Lq, B, d_model), jnp.float32)
    k_pos = jax.random.normal(ki[3], (Lk, B, d_model), jnp.float32)
    attn_mask = jnp.zeros((Lq, Lk), jnp.float32)
    # mask the last key position of batch element 1
    key_padding_mask = jnp.zeros((B, Lk), bool).at[1, Lk - 1].set(True)

    layer_keys = jax.random.split(k_par, num_layers)
    layers_params = [make_layer_params(k, d_model, dim_ff) for k in layer_keys]

    fwd = jax.jit(functools.partial(cx_encoder_forward, nhead=nhead))
    out, out_list, attn_list = fwd(query, key, attn_mask, key_padding_mask,
                                   q_pos, k_pos, layers_params)
    jax.block_until_ready(out)
    jax.block_until_ready(attn_list[-1])

    assert out.shape == (Lq, B, d_model)
    assert len(out_list) == num_layers and len(attn_list) == num_layers
    assert attn_list[0].shape == (B, Lq, Lk)

    # Sanity check vs pure-JAX f32 reference.  Tolerances account for bf16
    # MXU operands (f32 accumulate) + approx reciprocal in the softmax.
    ref_out, _, ref_attns = _reference_forward(
        query, key, attn_mask, key_padding_mask, q_pos, k_pos,
        layers_params, nhead)
    assert float(jnp.max(jnp.abs(out - ref_out))) < 1e-1
    assert float(jnp.max(jnp.abs(attn_list[-1] - ref_attns[-1]))) < 5e-2

    print("KERNEL_OK")
</pallas_src>

<mosaic_0001>
module attributes {stable_mosaic.version = 11 : i64} {
  func.func @_cx_encoder_kernel(%arg0: i32, %arg1: i32, %arg2: memref<2x8x32xf32, #tpu.memory_space<vmem>>, %arg3: memref<2x8x32xf32, #tpu.memory_space<vmem>>, %arg4: memref<2x8x32xf32, #tpu.memory_space<vmem>>, %arg5: memref<8x8xf32, #tpu.memory_space<vmem>>, %arg6: memref<2x1x8xf32, #tpu.memory_space<vmem>>, %arg7: memref<1x32x32xbf16, #tpu.memory_space<vmem>>, %arg8: memref<1x32x32xbf16, #tpu.memory_space<vmem>>, %arg9: memref<1x32x32xbf16, #tpu.memory_space<vmem>>, %arg10: memref<1x1x32xf32, #tpu.memory_space<vmem>>, %arg11: memref<1x1x32xf32, #tpu.memory_space<vmem>>, %arg12: memref<1x1x32xf32, #tpu.memory_space<vmem>>, %arg13: memref<1x32x32xbf16, #tpu.memory_space<vmem>>, %arg14: memref<1x1x32xf32, #tpu.memory_space<vmem>>, %arg15: memref<1x32x64xbf16, #tpu.memory_space<vmem>>, %arg16: memref<1x1x64xf32, #tpu.memory_space<vmem>>, %arg17: memref<1x64x32xbf16, #tpu.memory_space<vmem>>, %arg18: memref<1x1x32xf32, #tpu.memory_space<vmem>>, %arg19: memref<1x1x32xf32, #tpu.memory_space<vmem>>, %arg20: memref<1x1x32xf32, #tpu.memory_space<vmem>>, %arg21: memref<1x1x32xf32, #tpu.memory_space<vmem>>, %arg22: memref<1x1x32xf32, #tpu.memory_space<vmem>>, %arg23: memref<1x2x8x32xf32, #tpu.memory_space<vmem>>, %arg24: memref<1x2x8x8xf32, #tpu.memory_space<vmem>>, %arg25: memref<2x8x32xf32, #tpu.memory_space<vmem>>) attributes {dimension_semantics = [#tpu.dimension_semantics<parallel>, #tpu.dimension_semantics<arbitrary>], iteration_bounds = array<i64: 1, 2>, scalar_prefetch = 0 : i64, scratch_operands = 1 : i64, tpu.core_type = #tpu.core_type<tc>, window_params = [{transform_indices = @transform_0, window_bounds = array<i64: 2, 8, 32>}, {transform_indices = @transform_1, window_bounds = array<i64: 2, 8, 32>}, {transform_indices = @transform_2, window_bounds = array<i64: 2, 8, 32>}, {pipeline_mode = #tpu.pipeline_mode<synchronous>, transform_indices = @transform_3, window_bounds = array<i64: 8, 8>}, {transform_indices = @transform_4, window_bounds = array<i64: 2, 1, 8>}, {transform_indices = @transform_5, window_bounds = array<i64: 1, 32, 32>}, {transform_indices = @transform_6, window_bounds = array<i64: 1, 32, 32>}, {transform_indices = @transform_7, window_bounds = array<i64: 1, 32, 32>}, {transform_indices = @transform_8, window_bounds = array<i64: 1, 1, 32>}, {transform_indices = @transform_9, window_bounds = array<i64: 1, 1, 32>}, {transform_indices = @transform_10, window_bounds = array<i64: 1, 1, 32>}, {transform_indices = @transform_11, window_bounds = array<i64: 1, 32, 32>}, {transform_indices = @transform_12, window_bounds = array<i64: 1, 1, 32>}, {transform_indices = @transform_13, window_bounds = array<i64: 1, 32, 64>}, {transform_indices = @transform_14, window_bounds = array<i64: 1, 1, 64>}, {transform_indices = @transform_15, window_bounds = array<i64: 1, 64, 32>}, {transform_indices = @transform_16, window_bounds = array<i64: 1, 1, 32>}, {transform_indices = @transform_17, window_bounds = array<i64: 1, 1, 32>}, {transform_indices = @transform_18, window_bounds = array<i64: 1, 1, 32>}, {transform_indices = @transform_19, window_bounds = array<i64: 1, 1, 32>}, {transform_indices = @transform_20, window_bounds = array<i64: 1, 1, 32>}, {transform_indices = @transform_21, window_bounds = array<i64: 1, 2, 8, 32>}, {transform_indices = @transform_22, window_bounds = array<i64: 1, 2, 8, 8>}]} {
    %c0_i32 = arith.constant 0 : i32
    %0 = arith.cmpi eq, %arg1, %c0_i32 : i32
    %1 = arith.extui %0 : i1 to i32
    %c0_i32_0 = arith.constant 0 : i32
    %2 = arith.cmpi ne, %1, %c0_i32_0 : i32
    scf.if %2 {
      %c0_107 = arith.constant 0 : index
      %c0_108 = arith.constant 0 : index
      %c0_109 = arith.constant 0 : index
      %216 = vector.load %arg2[%c0_107, %c0_108, %c0_109] : memref<2x8x32xf32, #tpu.memory_space<vmem>>, vector<2x8x32xf32>
      %c0_110 = arith.constant 0 : index
      %c0_111 = arith.constant 0 : index
      %c0_112 = arith.constant 0 : index
      %217 = vector.load %arg25[%c0_110, %c0_111, %c0_112] : memref<2x8x32xf32, #tpu.memory_space<vmem>>, vector<2x8x32xf32>
      tpu.vector_store %arg25[%c0_110, %c0_111, %c0_112], %216 {strides = array<i32>} : memref<2x8x32xf32, #tpu.memory_space<vmem>>, vector<2x8x32xf32>,
    } else {
    }
    %c0 = arith.constant 0 : index
    %c0_1 = arith.constant 0 : index
    %c0_2 = arith.constant 0 : index
    %3 = vector.load %arg25[%c0, %c0_1, %c0_2] : memref<2x8x32xf32, #tpu.memory_space<vmem>>, vector<2x8x32xf32>
    %c0_3 = arith.constant 0 : index
    %c0_4 = arith.constant 0 : index
    %c0_5 = arith.constant 0 : index
    %4 = vector.load %arg4[%c0_3, %c0_4, %c0_5] : memref<2x8x32xf32, #tpu.memory_space<vmem>>, vector<2x8x32xf32>
    %5 = arith.addf %3, %4 : vector<2x8x32xf32>
    %c0_6 = arith.constant 0 : index
    %c0_7 = arith.constant 0 : index
    %c0_8 = arith.constant 0 : index
    %6 = vector.load %arg3[%c0_6, %c0_7, %c0_8] : memref<2x8x32xf32, #tpu.memory_space<vmem>>, vector<2x8x32xf32>
    %c0_9 = arith.constant 0 : index
    %c0_10 = arith.constant 0 : index
    %7 = vector.load %arg5[%c0_9, %c0_10] : memref<8x8xf32, #tpu.memory_space<vmem>>, vector<8x8xf32>
    %8 = vector.shape_cast %7 : vector<8x8xf32> to vector<1x8x8xf32>
    %c0_11 = arith.constant 0 : index
    %c0_12 = arith.constant 0 : index
    %c0_13 = arith.constant 0 : index
    %9 = vector.load %arg6[%c0_11, %c0_12, %c0_13] : memref<2x1x8xf32, #tpu.memory_space<vmem>>, vector<2x1x8xf32>
    %10 = vector.broadcast %8 : vector<1x8x8xf32> to vector<2x8x8xf32>
    %11 = vector.broadcast %9 : vector<2x1x8xf32> to vector<2x8x8xf32>
    %12 = arith.addf %10, %11 : vector<2x8x8xf32>
    %13 = vector.shape_cast %5 : vector<2x8x32xf32> to vector<16x32xf32>
    %14 = vector.shape_cast %6 : vector<2x8x32xf32> to vector<16x32xf32>
    %c0_14 = arith.constant 0 : index
    %c0_15 = arith.constant 0 : index
    %c0_16 = arith.constant 0 : index
    %15 = vector.load %arg7[%c0_14, %c0_15, %c0_16] : memref<1x32x32xbf16, #tpu.memory_space<vmem>>, vector<1x32x32xbf16>
    %16 = vector.shape_cast %15 : vector<1x32x32xbf16> to vector<32x32xbf16>
    %c0_17 = arith.constant 0 : index
    %c0_18 = arith.constant 0 : index
    %c0_19 = arith.constant 0 : index
    %17 = vector.load %arg10[%c0_17, %c0_18, %c0_19] : memref<1x1x32xf32, #tpu.memory_space<vmem>>, vector<1x1x32xf32>
    %18 = vector.shape_cast %17 : vector<1x1x32xf32> to vector<1x32xf32>
    %19 = arith.truncf %13 : vector<16x32xf32> to vector<16x32xbf16>
    %cst = arith.constant dense<0.000000e+00> : vector<16x32xf32>
    %20 = tpu.matmul %19, %16, %cst {dimension_numbers = #tpu.dot_dimension_numbers<[1], [0], [0], [1], [0, 0, 1, 1], [], []>} : vector<16x32xbf16>, vector<32x32xbf16>, vector<16x32xf32> -> vector<16x32xf32>
    %21 = vector.broadcast %18 : vector<1x32xf32> to vector<16x32xf32>
    %22 = arith.addf %20, %21 : vector<16x32xf32>
    %23 = vector.shape_cast %22 : vector<16x32xf32> to vector<2x8x32xf32>
    %c0_20 = arith.constant 0 : index
    %c0_21 = arith.constant 0 : index
    %c0_22 = arith.constant 0 : index
    %24 = vector.load %arg8[%c0_20, %c0_21, %c0_22] : memref<1x32x32xbf16, #tpu.memory_space<vmem>>, vector<1x32x32xbf16>
    %25 = vector.shape_cast %24 : vector<1x32x32xbf16> to vector<32x32xbf16>
    %c0_23 = arith.constant 0 : index
    %c0_24 = arith.constant 0 : index
    %c0_25 = arith.constant 0 : index
    %26 = vector.load %arg11[%c0_23, %c0_24, %c0_25] : memref<1x1x32xf32, #tpu.memory_space<vmem>>, vector<1x1x32xf32>
    %27 = vector.shape_cast %26 : vector<1x1x32xf32> to vector<1x32xf32>
    %28 = arith.truncf %14 : vector<16x32xf32> to vector<16x32xbf16>
    %cst_26 = arith.constant dense<0.000000e+00> : vector<16x32xf32>
    %29 = tpu.matmul %28, %25, %cst_26 {dimension_numbers = #tpu.dot_dimension_numbers<[1], [0], [0], [1], [0, 0, 1, 1], [], []>} : vector<16x32xbf16>, vector<32x32xbf16>, vector<16x32xf32> -> vector<16x32xf32>
    %30 = vector.broadcast %27 : vector<1x32xf32> to vector<16x32xf32>
    %31 = arith.addf %29, %30 : vector<16x32xf32>
    %32 = vector.shape_cast %31 : vector<16x32xf32> to vector<2x8x32xf32>
    %c0_27 = arith.constant 0 : index
    %c0_28 = arith.constant 0 : index
    %c0_29 = arith.constant 0 : index
    %33 = vector.load %arg9[%c0_27, %c0_28, %c0_29] : memref<1x32x32xbf16, #tpu.memory_space<vmem>>, vector<1x32x32xbf16>
    %34 = vector.shape_cast %33 : vector<1x32x32xbf16> to vector<32x32xbf16>
    %c0_30 = arith.constant 0 : index
    %c0_31 = arith.constant 0 : index
    %c0_32 = arith.constant 0 : index
    %35 = vector.load %arg12[%c0_30, %c0_31, %c0_32] : memref<1x1x32xf32, #tpu.memory_space<vmem>>, vector<1x1x32xf32>
    %36 = vector.shape_cast %35 : vector<1x1x32xf32> to vector<1x32xf32>
    %37 = arith.truncf %14 : vector<16x32xf32> to vector<16x32xbf16>
    %cst_33 = arith.constant dense<0.000000e+00> : vector<16x32xf32>
    %38 = tpu.matmul %37, %34, %cst_33 {dimension_numbers = #tpu.dot_dimension_numbers<[1], [0], [0], [1], [0, 0, 1, 1], [], []>} : vector<16x32xbf16>, vector<32x32xbf16>, vector<16x32xf32> -> vector<16x32xf32>
    %39 = vector.broadcast %36 : vector<1x32xf32> to vector<16x32xf32>
    %40 = arith.addf %38, %39 : vector<16x32xf32>
    %41 = vector.shape_cast %40 : vector<16x32xf32> to vector<2x8x32xf32>
    %cst_34 = arith.constant 0.000000e+00 : f32
    %42 = vector.broadcast %cst_34 : f32 to vector<2x8x8xf32>
    %43 = vector.extract_strided_slice %23 {offsets = [0, 0, 0], sizes = [2, 8, 8], strides = [1, 1, 1]} : vector<2x8x32xf32> to vector<2x8x8xf32>
    %44 = arith.truncf %43 : vector<2x8x8xf32> to vector<2x8x8xbf16>
    %45 = vector.extract_strided_slice %32 {offsets = [0, 0, 0], sizes = [2, 8, 8], strides = [1, 1, 1]} : vector<2x8x32xf32> to vector<2x8x8xf32>
    %46 = arith.truncf %45 : vector<2x8x8xf32> to vector<2x8x8xbf16>
    %47 = vector.extract_strided_slice %41 {offsets = [0, 0, 0], sizes = [2, 8, 8], strides = [1, 1, 1]} : vector<2x8x32xf32> to vector<2x8x8xf32>
    %48 = arith.truncf %47 : vector<2x8x8xf32> to vector<2x8x8xbf16>
    "tpu.trace_start"() <{level = 10 : i32, message = "bqd,bkd->bqk"}> : () -> ()
    %cst_35 = arith.constant dense<0.000000e+00> : vector<2x8x8xf32>
    %49 = tpu.matmul %44, %46, %cst_35 {dimension_numbers = #tpu.dot_dimension_numbers<[2], [2], [1], [1], [0, 0, 0, 1, 1, 1], [0], [0]>} : vector<2x8x8xbf16>, vector<2x8x8xbf16>, vector<2x8x8xf32> -> vector<2x8x8xf32>
    "tpu.trace_stop"() : () -> ()
    %50 = arith.addf %49, %12 : vector<2x8x8xf32>
    %cst_36 = arith.constant dense<0xFF800000> : vector<2x8xf32>
    %51 = vector.multi_reduction <maximumf>, %50, %cst_36 [2] : vector<2x8x8xf32> to vector<2x8xf32>
    %52 = vector.shape_cast %51 : vector<2x8xf32> to vector<2x8x1xf32>
    %53 = vector.broadcast %52 : vector<2x8x1xf32> to vector<2x8x8xf32>
    %54 = arith.subf %50, %53 : vector<2x8x8xf32>
    %55 = math.exp %54 : vector<2x8x8xf32>
    %cst_37 = arith.constant dense<0.000000e+00> : vector<2x8xf32>
    %56 = vector.multi_reduction <add>, %55, %cst_37 [2] : vector<2x8x8xf32> to vector<2x8xf32>
    %57 = vector.shape_cast %56 : vector<2x8xf32> to vector<2x8x1xf32>
    %58 = tpu.reciprocal %57 {approx = true} : vector<2x8x1xf32> -> vector<2x8x1xf32>
    %59 = vector.broadcast %58 : vector<2x8x1xf32> to vector<2x8x8xf32>
    %60 = arith.mulf %55, %59 : vector<2x8x8xf32>
    %61 = arith.addf %42, %60 : vector<2x8x8xf32>
    %62 = arith.truncf %60 : vector<2x8x8xf32> to vector<2x8x8xbf16>
    "tpu.trace_start"() <{level = 10 : i32, message = "bqk,bkd->bqd"}> : () -> ()
    %cst_38 = arith.constant dense<0.000000e+00> : vector<2x8x8xf32>
    %63 = tpu.matmul %62, %48, %cst_38 {dimension_numbers = #tpu.dot_dimension_numbers<[2], [1], [1], [2], [0, 0, 0, 1, 1, 2], [0], [0]>} : vector<2x8x8xbf16>, vector<2x8x8xbf16>, vector<2x8x8xf32> -> vector<2x8x8xf32>
    "tpu.trace_stop"() : () -> ()
    %64 = vector.extract_strided_slice %23 {offsets = [0, 0, 8], sizes = [2, 8, 8], strides = [1, 1, 1]} : vector<2x8x32xf32> to vector<2x8x8xf32>
    %65 = arith.truncf %64 : vector<2x8x8xf32> to vector<2x8x8xbf16>
    %66 = vector.extract_strided_slice %32 {offsets = [0, 0, 8], sizes = [2, 8, 8], strides = [1, 1, 1]} : vector<2x8x32xf32> to vector<2x8x8xf32>
    %67 = arith.truncf %66 : vector<2x8x8xf32> to vector<2x8x8xbf16>
    %68 = vector.extract_strided_slice %41 {offsets = [0, 0, 8], sizes = [2, 8, 8], strides = [1, 1, 1]} : vector<2x8x32xf32> to vector<2x8x8xf32>
    %69 = arith.truncf %68 : vector<2x8x8xf32> to vector<2x8x8xbf16>
    "tpu.trace_start"() <{level = 10 : i32, message = "bqd,bkd->bqk"}> : () -> ()
    %cst_39 = arith.constant dense<0.000000e+00> : vector<2x8x8xf32>
    %70 = tpu.matmul %65, %67, %cst_39 {dimension_numbers = #tpu.dot_dimension_numbers<[2], [2], [1], [1], [0, 0, 0, 1, 1, 1], [0], [0]>} : vector<2x8x8xbf16>, vector<2x8x8xbf16>, vector<2x8x8xf32> -> vector<2x8x8xf32>
    "tpu.trace_stop"() : () -> ()
    %71 = arith.addf %70, %12 : vector<2x8x8xf32>
    %cst_40 = arith.constant dense<0xFF800000> : vector<2x8xf32>
    %72 = vector.multi_reduction <maximumf>, %71, %cst_40 [2] : vector<2x8x8xf32> to vector<2x8xf32>
    %73 = vector.shape_cast %72 : vector<2x8xf32> to vector<2x8x1xf32>
    %74 = vector.broadcast %73 : vector<2x8x1xf32> to vector<2x8x8xf32>
    %75 = arith.subf %71, %74 : vector<2x8x8xf32>
    %76 = math.exp %75 : vector<2x8x8xf32>
    %cst_41 = arith.constant dense<0.000000e+00> : vector<2x8xf32>
    %77 = vector.multi_reduction <add>, %76, %cst_41 [2] : vector<2x8x8xf32> to vector<2x8xf32>
    %78 = vector.shape_cast %77 : vector<2x8xf32> to vector<2x8x1xf32>
    %79 = tpu.reciprocal %78 {approx = true} : vector<2x8x1xf32> -> vector<2x8x1xf32>
    %80 = vector.broadcast %79 : vector<2x8x1xf32> to vector<2x8x8xf32>
    %81 = arith.mulf %76, %80 : vector<2x8x8xf32>
    %82 = arith.addf %61, %81 : vector<2x8x8xf32>
    %83 = arith.truncf %81 : vector<2x8x8xf32> to vector<2x8x8xbf16>
    "tpu.trace_start"() <{level = 10 : i32, message = "bqk,bkd->bqd"}> : () -> ()
    %cst_42 = arith.constant dense<0.000000e+00> : vector<2x8x8xf32>
    %84 = tpu.matmul %83, %69, %cst_42 {dimension_numbers = #tpu.dot_dimension_numbers<[2], [1], [1], [2], [0, 0, 0, 1, 1, 2], [0], [0]>} : vector<2x8x8xbf16>, vector<2x8x8xbf16>, vector<2x8x8xf32> -> vector<2x8x8xf32>
    "tpu.trace_stop"() : () -> ()
    %85 = vector.extract_strided_slice %23 {offsets = [0, 0, 16], sizes = [2, 8, 8], strides = [1, 1, 1]} : vector<2x8x32xf32> to vector<2x8x8xf32>
    %86 = arith.truncf %85 : vector<2x8x8xf32> to vector<2x8x8xbf16>
    %87 = vector.extract_strided_slice %32 {offsets = [0, 0, 16], sizes = [2, 8, 8], strides = [1, 1, 1]} : vector<2x8x32xf32> to vector<2x8x8xf32>
    %88 = arith.truncf %87 : vector<2x8x8xf32> to vector<2x8x8xbf16>
    %89 = vector.extract_strided_slice %41 {offsets = [0, 0, 16], sizes = [2, 8, 8], strides = [1, 1, 1]} : vector<2x8x32xf32> to vector<2x8x8xf32>
    %90 = arith.truncf %89 : vector<2x8x8xf32> to vector<2x8x8xbf16>
    "tpu.trace_start"() <{level = 10 : i32, message = "bqd,bkd->bqk"}> : () -> ()
    %cst_43 = arith.constant dense<0.000000e+00> : vector<2x8x8xf32>
    %91 = tpu.matmul %86, %88, %cst_43 {dimension_numbers = #tpu.dot_dimension_numbers<[2], [2], [1], [1], [0, 0, 0, 1, 1, 1], [0], [0]>} : vector<2x8x8xbf16>, vector<2x8x8xbf16>, vector<2x8x8xf32> -> vector<2x8x8xf32>
    "tpu.trace_stop"() : () -> ()
    %92 = arith.addf %91, %12 : vector<2x8x8xf32>
    %cst_44 = arith.constant dense<0xFF800000> : vector<2x8xf32>
    %93 = vector.multi_reduction <maximumf>, %92, %cst_44 [2] : vector<2x8x8xf32> to vector<2x8xf32>
    %94 = vector.shape_cast %93 : vector<2x8xf32> to vector<2x8x1xf32>
    %95 = vector.broadcast %94 : vector<2x8x1xf32> to vector<2x8x8xf32>
    %96 = arith.subf %92, %95 : vector<2x8x8xf32>
    %97 = math.exp %96 : vector<2x8x8xf32>
    %cst_45 = arith.constant dense<0.000000e+00> : vector<2x8xf32>
    %98 = vector.multi_reduction <add>, %97, %cst_45 [2] : vector<2x8x8xf32> to vector<2x8xf32>
    %99 = vector.shape_cast %98 : vector<2x8xf32> to vector<2x8x1xf32>
    %100 = tpu.reciprocal %99 {approx = true} : vector<2x8x1xf32> -> vector<2x8x1xf32>
    %101 = vector.broadcast %100 : vector<2x8x1xf32> to vector<2x8x8xf32>
    %102 = arith.mulf %97, %101 : vector<2x8x8xf32>
    %103 = arith.addf %82, %102 : vector<2x8x8xf32>
    %104 = arith.truncf %102 : vector<2x8x8xf32> to vector<2x8x8xbf16>
    "tpu.trace_start"() <{level = 10 : i32, message = "bqk,bkd->bqd"}> : () -> ()
    %cst_46 = arith.constant dense<0.000000e+00> : vector<2x8x8xf32>
    %105 = tpu.matmul %104, %90, %cst_46 {dimension_numbers = #tpu.dot_dimension_numbers<[2], [1], [1], [2], [0, 0, 0, 1, 1, 2], [0], [0]>} : vector<2x8x8xbf16>, vector<2x8x8xbf16>, vector<2x8x8xf32> -> vector<2x8x8xf32>
    "tpu.trace_stop"() : () -> ()
    %106 = vector.extract_strided_slice %23 {offsets = [0, 0, 24], sizes = [2, 8, 8], strides = [1, 1, 1]} : vector<2x8x32xf32> to vector<2x8x8xf32>
    %107 = arith.truncf %106 : vector<2x8x8xf32> to vector<2x8x8xbf16>
    %108 = vector.extract_strided_slice %32 {offsets = [0, 0, 24], sizes = [2, 8, 8], strides = [1, 1, 1]} : vector<2x8x32xf32> to vector<2x8x8xf32>
    %109 = arith.truncf %108 : vector<2x8x8xf32> to vector<2x8x8xbf16>
    %110 = vector.extract_strided_slice %41 {offsets = [0, 0, 24], sizes = [2, 8, 8], strides = [1, 1, 1]} : vector<2x8x32xf32> to vector<2x8x8xf32>
    %111 = arith.truncf %110 : vector<2x8x8xf32> to vector<2x8x8xbf16>
    "tpu.trace_start"() <{level = 10 : i32, message = "bqd,bkd->bqk"}> : () -> ()
    %cst_47 = arith.constant dense<0.000000e+00> : vector<2x8x8xf32>
    %112 = tpu.matmul %107, %109, %cst_47 {dimension_numbers = #tpu.dot_dimension_numbers<[2], [2], [1], [1], [0, 0, 0, 1, 1, 1], [0], [0]>} : vector<2x8x8xbf16>, vector<2x8x8xbf16>, vector<2x8x8xf32> -> vector<2x8x8xf32>
    "tpu.trace_stop"() : () -> ()
    %113 = arith.addf %112, %12 : vector<2x8x8xf32>
    %cst_48 = arith.constant dense<0xFF800000> : vector<2x8xf32>
    %114 = vector.multi_reduction <maximumf>, %113, %cst_48 [2] : vector<2x8x8xf32> to vector<2x8xf32>
    %115 = vector.shape_cast %114 : vector<2x8xf32> to vector<2x8x1xf32>
    %116 = vector.broadcast %115 : vector<2x8x1xf32> to vector<2x8x8xf32>
    %117 = arith.subf %113, %116 : vector<2x8x8xf32>
    %118 = math.exp %117 : vector<2x8x8xf32>
    %cst_49 = arith.constant dense<0.000000e+00> : vector<2x8xf32>
    %119 = vector.multi_reduction <add>, %118, %cst_49 [2] : vector<2x8x8xf32> to vector<2x8xf32>
    %120 = vector.shape_cast %119 : vector<2x8xf32> to vector<2x8x1xf32>
    %121 = tpu.reciprocal %120 {approx = true} : vector<2x8x1xf32> -> vector<2x8x1xf32>
    %122 = vector.broadcast %121 : vector<2x8x1xf32> to vector<2x8x8xf32>
    %123 = arith.mulf %118, %122 : vector<2x8x8xf32>
    %124 = arith.addf %103, %123 : vector<2x8x8xf32>
    %125 = arith.truncf %123 : vector<2x8x8xf32> to vector<2x8x8xbf16>
    "tpu.trace_start"() <{level = 10 : i32, message = "bqk,bkd->bqd"}> : () -> ()
    %cst_50 = arith.constant dense<0.000000e+00> : vector<2x8x8xf32>
    %126 = tpu.matmul %125, %111, %cst_50 {dimension_numbers = #tpu.dot_dimension_numbers<[2], [1], [1], [2], [0, 0, 0, 1, 1, 2], [0], [0]>} : vector<2x8x8xbf16>, vector<2x8x8xbf16>, vector<2x8x8xf32> -> vector<2x8x8xf32>
    "tpu.trace_stop"() : () -> ()
    %cst_51 = arith.constant 2.500000e-01 : f32
    %127 = vector.broadcast %cst_51 : f32 to vector<2x8x8xf32>
    %128 = arith.mulf %124, %127 : vector<2x8x8xf32>
    %c0_52 = arith.constant 0 : index
    %c0_53 = arith.constant 0 : index
    %c0_54 = arith.constant 0 : index
    %c0_55 = arith.constant 0 : index
    %129 = vector.load %arg24[%c0_52, %c0_53, %c0_54, %c0_55] : memref<1x2x8x8xf32, #tpu.memory_space<vmem>>, vector<1x2x8x8xf32>
    %130 = vector.shape_cast %129 : vector<1x2x8x8xf32> to vector<2x8x8xf32>
    %131 = vector.shape_cast %128 : vector<2x8x8xf32> to vector<1x2x8x8xf32>
    tpu.vector_store %arg24[%c0_52, %c0_53, %c0_54, %c0_55], %131 {strides = array<i32>} : memref<1x2x8x8xf32, #tpu.memory_space<vmem>>, vector<1x2x8x8xf32>,
    %132 = tpu.concatenate %63, %84, %105, %126 in 2 : vector<2x8x8xf32>, vector<2x8x8xf32>, vector<2x8x8xf32>, vector<2x8x8xf32> -> vector<2x8x32xf32>
    %133 = vector.shape_cast %132 : vector<2x8x32xf32> to vector<16x32xf32>
    %c0_56 = arith.constant 0 : index
    %c0_57 = arith.constant 0 : index
    %c0_58 = arith.constant 0 : index
    %134 = vector.load %arg13[%c0_56, %c0_57, %c0_58] : memref<1x32x32xbf16, #tpu.memory_space<vmem>>, vector<1x32x32xbf16>
    %135 = vector.shape_cast %134 : vector<1x32x32xbf16> to vector<32x32xbf16>
    %c0_59 = arith.constant 0 : index
    %c0_60 = arith.constant 0 : index
    %c0_61 = arith.constant 0 : index
    %136 = vector.load %arg14[%c0_59, %c0_60, %c0_61] : memref<1x1x32xf32, #tpu.memory_space<vmem>>, vector<1x1x32xf32>
    %137 = vector.shape_cast %136 : vector<1x1x32xf32> to vector<1x32xf32>
    %138 = arith.truncf %133 : vector<16x32xf32> to vector<16x32xbf16>
    %cst_62 = arith.constant dense<0.000000e+00> : vector<16x32xf32>
    %139 = tpu.matmul %138, %135, %cst_62 {dimension_numbers = #tpu.dot_dimension_numbers<[1], [0], [0], [1], [0, 0, 1, 1], [], []>} : vector<16x32xbf16>, vector<32x32xbf16>, vector<16x32xf32> -> vector<16x32xf32>
    %140 = vector.broadcast %137 : vector<1x32xf32> to vector<16x32xf32>
    %141 = arith.addf %139, %140 : vector<16x32xf32>
    %142 = vector.shape_cast %3 : vector<2x8x32xf32> to vector<16x32xf32>
    %143 = arith.addf %142, %141 : vector<16x32xf32>
    %c0_63 = arith.constant 0 : index
    %c0_64 = arith.constant 0 : index
    %c0_65 = arith.constant 0 : index
    %144 = vector.load %arg19[%c0_63, %c0_64, %c0_65] : memref<1x1x32xf32, #tpu.memory_space<vmem>>, vector<1x1x32xf32>
    %145 = vector.shape_cast %144 : vector<1x1x32xf32> to vector<1x32xf32>
    %c0_66 = arith.constant 0 : index
    %c0_67 = arith.constant 0 : index
    %c0_68 = arith.constant 0 : index
    %146 = vector.load %arg20[%c0_66, %c0_67, %c0_68] : memref<1x1x32xf32, #tpu.memory_space<vmem>>, vector<1x1x32xf32>
    %147 = vector.shape_cast %146 : vector<1x1x32xf32> to vector<1x32xf32>
    %cst_69 = arith.constant dense<0.000000e+00> : vector<16xf32>
    %148 = vector.multi_reduction <add>, %143, %cst_69 [1] : vector<16x32xf32> to vector<16xf32>
    %149 = vector.shape_cast %148 : vector<16xf32> to vector<16x1xf32>
    %cst_70 = arith.constant 3.200000e+01 : f32
    %150 = vector.broadcast %cst_70 : f32 to vector<16x1xf32>
    %151 = arith.divf %149, %150 : vector<16x1xf32>
    %152 = vector.broadcast %151 : vector<16x1xf32> to vector<16x32xf32>
    %153 = arith.subf %143, %152 : vector<16x32xf32>
    %154 = arith.mulf %153, %153 : vector<16x32xf32>
    %cst_71 = arith.constant dense<0.000000e+00> : vector<16xf32>
    %155 = vector.multi_reduction <add>, %154, %cst_71 [1] : vector<16x32xf32> to vector<16xf32>
    %156 = vector.shape_cast %155 : vector<16xf32> to vector<16x1xf32>
    %cst_72 = arith.constant 3.200000e+01 : f32
    %157 = vector.broadcast %cst_72 : f32 to vector<16x1xf32>
    %158 = arith.divf %156, %157 : vector<16x1xf32>
    %cst_73 = arith.constant 9.99999974E-6 : f32
    %159 = vector.broadcast %cst_73 : f32 to vector<16x1xf32>
    %160 = arith.addf %158, %159 : vector<16x1xf32>
    %161 = math.rsqrt %160 : vector<16x1xf32>
    %162 = vector.broadcast %161 : vector<16x1xf32> to vector<16x32xf32>
    %163 = arith.mulf %153, %162 : vector<16x32xf32>
    %164 = vector.broadcast %145 : vector<1x32xf32> to vector<16x32xf32>
    %165 = arith.mulf %163, %164 : vector<16x32xf32>
    %166 = vector.broadcast %147 : vector<1x32xf32> to vector<16x32xf32>
    %167 = arith.addf %165, %166 : vector<16x32xf32>
    %c0_74 = arith.constant 0 : index
    %c0_75 = arith.constant 0 : index
    %c0_76 = arith.constant 0 : index
    %168 = vector.load %arg15[%c0_74, %c0_75, %c0_76] : memref<1x32x64xbf16, #tpu.memory_space<vmem>>, vector<1x32x64xbf16>
    %169 = vector.shape_cast %168 : vector<1x32x64xbf16> to vector<32x64xbf16>
    %c0_77 = arith.constant 0 : index
    %c0_78 = arith.constant 0 : index
    %c0_79 = arith.constant 0 : index
    %170 = vector.load %arg16[%c0_77, %c0_78, %c0_79] : memref<1x1x64xf32, #tpu.memory_space<vmem>>, vector<1x1x64xf32>
    %171 = vector.shape_cast %170 : vector<1x1x64xf32> to vector<1x64xf32>
    %172 = arith.truncf %167 : vector<16x32xf32> to vector<16x32xbf16>
    %cst_80 = arith.constant dense<0.000000e+00> : vector<16x64xf32>
    %173 = tpu.matmul %172, %169, %cst_80 {dimension_numbers = #tpu.dot_dimension_numbers<[1], [0], [0], [1], [0, 0, 1, 1], [], []>} : vector<16x32xbf16>, vector<32x64xbf16>, vector<16x64xf32> -> vector<16x64xf32>
    %174 = vector.broadcast %171 : vector<1x64xf32> to vector<16x64xf32>
    %175 = arith.addf %173, %174 : vector<16x64xf32>
    %cst_81 = arith.constant 0.000000e+00 : f32
    %176 = vector.broadcast %cst_81 : f32 to vector<16x64xf32>
    %177 = arith.maximumf %175, %176 : vector<16x64xf32>
    %c0_82 = arith.constant 0 : index
    %c0_83 = arith.constant 0 : index
    %c0_84 = arith.constant 0 : index
    %178 = vector.load %arg17[%c0_82, %c0_83, %c0_84] : memref<1x64x32xbf16, #tpu.memory_space<vmem>>, vector<1x64x32xbf16>
    %179 = vector.shape_cast %178 : vector<1x64x32xbf16> to vector<64x32xbf16>
    %c0_85 = arith.constant 0 : index
    %c0_86 = arith.constant 0 : index
    %c0_87 = arith.constant 0 : index
    %180 = vector.load %arg18[%c0_85, %c0_86, %c0_87] : memref<1x1x32xf32, #tpu.memory_space<vmem>>, vector<1x1x32xf32>
    %181 = vector.shape_cast %180 : vector<1x1x32xf32> to vector<1x32xf32>
    %182 = arith.truncf %177 : vector<16x64xf32> to vector<16x64xbf16>
    %cst_88 = arith.constant dense<0.000000e+00> : vector<16x32xf32>
    %183 = tpu.matmul %182, %179, %cst_88 {dimension_numbers = #tpu.dot_dimension_numbers<[1], [0], [0], [1], [0, 0, 1, 1], [], []>} : vector<16x64xbf16>, vector<64x32xbf16>, vector<16x32xf32> -> vector<16x32xf32>
    %184 = vector.broadcast %181 : vector<1x32xf32> to vector<16x32xf32>
    %185 = arith.addf %183, %184 : vector<16x32xf32>
    %186 = arith.addf %167, %185 : vector<16x32xf32>
    %c0_89 = arith.constant 0 : index
    %c0_90 = arith.constant 0 : index
    %c0_91 = arith.constant 0 : index
    %187 = vector.load %arg21[%c0_89, %c0_90, %c0_91] : memref<1x1x32xf32, #tpu.memory_space<vmem>>, vector<1x1x32xf32>
    %188 = vector.shape_cast %187 : vector<1x1x32xf32> to vector<1x32xf32>
    %c0_92 = arith.constant 0 : index
    %c0_93 = arith.constant 0 : index
    %c0_94 = arith.constant 0 : index
    %189 = vector.load %arg22[%c0_92, %c0_93, %c0_94] : memref<1x1x32xf32, #tpu.memory_space<vmem>>, vector<1x1x32xf32>
    %190 = vector.shape_cast %189 : vector<1x1x32xf32> to vector<1x32xf32>
    %cst_95 = arith.constant dense<0.000000e+00> : vector<16xf32>
    %191 = vector.multi_reduction <add>, %186, %cst_95 [1] : vector<16x32xf32> to vector<16xf32>
    %192 = vector.shape_cast %191 : vector<16xf32> to vector<16x1xf32>
    %cst_96 = arith.constant 3.200000e+01 : f32
    %193 = vector.broadcast %cst_96 : f32 to vector<16x1xf32>
    %194 = arith.divf %192, %193 : vector<16x1xf32>
    %195 = vector.broadcast %194 : vector<16x1xf32> to vector<16x32xf32>
    %196 = arith.subf %186, %195 : vector<16x32xf32>
    %197 = arith.mulf %196, %196 : vector<16x32xf32>
    %cst_97 = arith.constant dense<0.000000e+00> : vector<16xf32>
    %198 = vector.multi_reduction <add>, %197, %cst_97 [1] : vector<16x32xf32> to vector<16xf32>
    %199 = vector.shape_cast %198 : vector<16xf32> to vector<16x1xf32>
    %cst_98 = arith.constant 3.200000e+01 : f32
    %200 = vector.broadcast %cst_98 : f32 to vector<16x1xf32>
    %201 = arith.divf %199, %200 : vector<16x1xf32>
    %cst_99 = arith.constant 9.99999974E-6 : f32
    %202 = vector.broadcast %cst_99 : f32 to vector<16x1xf32>
    %203 = arith.addf %201, %202 : vector<16x1xf32>
    %204 = math.rsqrt %203 : vector<16x1xf32>
    %205 = vector.broadcast %204 : vector<16x1xf32> to vector<16x32xf32>
    %206 = arith.mulf %196, %205 : vector<16x32xf32>
    %207 = vector.broadcast %188 : vector<1x32xf32> to vector<16x32xf32>
    %208 = arith.mulf %206, %207 : vector<16x32xf32>
    %209 = vector.broadcast %190 : vector<1x32xf32> to vector<16x32xf32>
    %210 = arith.addf %208, %209 : vector<16x32xf32>
    %211 = vector.shape_cast %210 : vector<16x32xf32> to vector<2x8x32xf32>
    %c0_100 = arith.constant 0 : index
    %c0_101 = arith.constant 0 : index
    %c0_102 = arith.constant 0 : index
    %212 = vector.load %arg25[%c0_100, %c0_101, %c0_102] : memref<2x8x32xf32, #tpu.memory_space<vmem>>, vector<2x8x32xf32>
    tpu.vector_store %arg25[%c0_100, %c0_101, %c0_102], %211 {strides = array<i32>} : memref<2x8x32xf32, #tpu.memory_space<vmem>>, vector<2x8x32xf32>,
    %c0_103 = arith.constant 0 : index
    %c0_104 = arith.constant 0 : index
    %c0_105 = arith.constant 0 : index
    %c0_106 = arith.constant 0 : index
    %213 = vector.load %arg23[%c0_103, %c0_104, %c0_105, %c0_106] : memref<1x2x8x32xf32, #tpu.memory_space<vmem>>, vector<1x2x8x32xf32>
    %214 = vector.shape_cast %213 : vector<1x2x8x32xf32> to vector<2x8x32xf32>
    %215 = vector.shape_cast %211 : vector<2x8x32xf32> to vector<1x2x8x32xf32>
    tpu.vector_store %arg23[%c0_103, %c0_104, %c0_105, %c0_106], %215 {strides = array<i32>} : memref<1x2x8x32xf32, #tpu.memory_space<vmem>>, vector<1x2x8x32xf32>,
    return
  }
  func.func @transform_0(%arg0: i32, %arg1: i32) -> (i32, i32, i32) {
    %c0_i32 = arith.constant 0 : i32
    %c0_i32_0 = arith.constant 0 : i32
    %c0_i32_1 = arith.constant 0 : i32
    return %arg0, %c0_i32, %c0_i32_0 : i32, i32, i32
  }
  func.func @transform_1(%arg0: i32, %arg1: i32) -> (i32, i32, i32) {
    %c0_i32 = arith.constant 0 : i32
    %c0_i32_0 = arith.constant 0 : i32
    %c0_i32_1 = arith.constant 0 : i32
    return %arg0, %c0_i32, %c0_i32_0 : i32, i32, i32
  }
  func.func @transform_2(%arg0: i32, %arg1: i32) -> (i32, i32, i32) {
    %c0_i32 = arith.constant 0 : i32
    %c0_i32_0 = arith.constant 0 : i32
    %c0_i32_1 = arith.constant 0 : i32
    return %arg0, %c0_i32, %c0_i32_0 : i32, i32, i32
  }
  func.func @transform_3(%arg0: i32, %arg1: i32) -> (i32, i32) {
    %c0_i32 = arith.constant 0 : i32
    %c0_i32_0 = arith.constant 0 : i32
    %c0_i32_1 = arith.constant 0 : i32
    return %c0_i32, %c0_i32_0 : i32, i32
  }
  func.func @transform_4(%arg0: i32, %arg1: i32) -> (i32, i32, i32) {
    %c0_i32 = arith.constant 0 : i32
    %c0_i32_0 = arith.constant 0 : i32
    %c0_i32_1 = arith.constant 0 : i32
    return %arg0, %c0_i32, %c0_i32_0 : i32, i32, i32
  }
  func.func @transform_5(%arg0: i32, %arg1: i32) -> (i32, i32, i32) {
    %c0_i32 = arith.constant 0 : i32
    %c0_i32_0 = arith.constant 0 : i32
    %c0_i32_1 = arith.constant 0 : i32
    return %arg1, %c0_i32, %c0_i32_0 : i32, i32, i32
  }
  func.func @transform_6(%arg0: i32, %arg1: i32) -> (i32, i32, i32) {
    %c0_i32 = arith.constant 0 : i32
    %c0_i32_0 = arith.constant 0 : i32
    %c0_i32_1 = arith.constant 0 : i32
    return %arg1, %c0_i32, %c0_i32_0 : i32, i32, i32
  }
  func.func @transform_7(%arg0: i32, %arg1: i32) -> (i32, i32, i32) {
    %c0_i32 = arith.constant 0 : i32
    %c0_i32_0 = arith.constant 0 : i32
    %c0_i32_1 = arith.constant 0 : i32
    return %arg1, %c0_i32, %c0_i32_0 : i32, i32, i32
  }
  func.func @transform_8(%arg0: i32, %arg1: i32) -> (i32, i32, i32) {
    %c0_i32 = arith.constant 0 : i32
    %c0_i32_0 = arith.constant 0 : i32
    %c0_i32_1 = arith.constant 0 : i32
    return %arg1, %c0_i32, %c0_i32_0 : i32, i32, i32
  }
  func.func @transform_9(%arg0: i32, %arg1: i32) -> (i32, i32, i32) {
    %c0_i32 = arith.constant 0 : i32
    %c0_i32_0 = arith.constant 0 : i32
    %c0_i32_1 = arith.constant 0 : i32
    return %arg1, %c0_i32, %c0_i32_0 : i32, i32, i32
  }
  func.func @transform_10(%arg0: i32, %arg1: i32) -> (i32, i32, i32) {
    %c0_i32 = arith.constant 0 : i32
    %c0_i32_0 = arith.constant 0 : i32
    %c0_i32_1 = arith.constant 0 : i32
    return %arg1, %c0_i32, %c0_i32_0 : i32, i32, i32
  }
  func.func @transform_11(%arg0: i32, %arg1: i32) -> (i32, i32, i32) {
    %c0_i32 = arith.constant 0 : i32
    %c0_i32_0 = arith.constant 0 : i32
    %c0_i32_1 = arith.constant 0 : i32
    return %arg1, %c0_i32, %c0_i32_0 : i32, i32, i32
  }
  func.func @transform_12(%arg0: i32, %arg1: i32) -> (i32, i32, i32) {
    %c0_i32 = arith.constant 0 : i32
    %c0_i32_0 = arith.constant 0 : i32
    %c0_i32_1 = arith.constant 0 : i32
    return %arg1, %c0_i32, %c0_i32_0 : i32, i32, i32
  }
  func.func @transform_13(%arg0: i32, %arg1: i32) -> (i32, i32, i32) {
    %c0_i32 = arith.constant 0 : i32
    %c0_i32_0 = arith.constant 0 : i32
    %c0_i32_1 = arith.constant 0 : i32
    return %arg1, %c0_i32, %c0_i32_0 : i32, i32, i32
  }
  func.func @transform_14(%arg0: i32, %arg1: i32) -> (i32, i32, i32) {
    %c0_i32 = arith.constant 0 : i32
    %c0_i32_0 = arith.constant 0 : i32
    %c0_i32_1 = arith.constant 0 : i32
    return %arg1, %c0_i32, %c0_i32_0 : i32, i32, i32
  }
  func.func @transform_15(%arg0: i32, %arg1: i32) -> (i32, i32, i32) {
    %c0_i32 = arith.constant 0 : i32
    %c0_i32_0 = arith.constant 0 : i32
    %c0_i32_1 = arith.constant 0 : i32
    return %arg1, %c0_i32, %c0_i32_0 : i32, i32, i32
  }
  func.func @transform_16(%arg0: i32, %arg1: i32) -> (i32, i32, i32) {
    %c0_i32 = arith.constant 0 : i32
    %c0_i32_0 = arith.constant 0 : i32
    %c0_i32_1 = arith.constant 0 : i32
    return %arg1, %c0_i32, %c0_i32_0 : i32, i32, i32
  }
  func.func @transform_17(%arg0: i32, %arg1: i32) -> (i32, i32, i32) {
    %c0_i32 = arith.constant 0 : i32
    %c0_i32_0 = arith.constant 0 : i32
    %c0_i32_1 = arith.constant 0 : i32
    return %arg1, %c0_i32, %c0_i32_0 : i32, i32, i32
  }
  func.func @transform_18(%arg0: i32, %arg1: i32) -> (i32, i32, i32) {
    %c0_i32 = arith.constant 0 : i32
    %c0_i32_0 = arith.constant 0 : i32
    %c0_i32_1 = arith.constant 0 : i32
    return %arg1, %c0_i32, %c0_i32_0 : i32, i32, i32
  }
  func.func @transform_19(%arg0: i32, %arg1: i32) -> (i32, i32, i32) {
    %c0_i32 = arith.constant 0 : i32
    %c0_i32_0 = arith.constant 0 : i32
    %c0_i32_1 = arith.constant 0 : i32
    return %arg1, %c0_i32, %c0_i32_0 : i32, i32, i32
  }
  func.func @transform_20(%arg0: i32, %arg1: i32) -> (i32, i32, i32) {
    %c0_i32 = arith.constant 0 : i32
    %c0_i32_0 = arith.constant 0 : i32
    %c0_i32_1 = arith.constant 0 : i32
    return %arg1, %c0_i32, %c0_i32_0 : i32, i32, i32
  }
  func.func @transform_21(%arg0: i32, %arg1: i32) -> (i32, i32, i32, i32) {
    %c0_i32 = arith.constant 0 : i32
    %c0_i32_0 = arith.constant 0 : i32
    %c0_i32_1 = arith.constant 0 : i32
    return %arg1, %arg0, %c0_i32, %c0_i32_0 : i32, i32, i32, i32
  }
  func.func @transform_22(%arg0: i32, %arg1: i32) -> (i32, i32, i32, i32) {
    %c0_i32 = arith.constant 0 : i32
    %c0_i32_0 = arith.constant 0 : i32
    %c0_i32_1 = arith.constant 0 : i32
    return %arg1, %arg0, %c0_i32, %c0_i32_0 : i32, i32, i32, i32
  }
}

</mosaic_0001>

<llo_original>
// kernel: cx_encoder_forward.1
$region0: #{cx_encoder_forward.1}
  #allocation0 [shape = 'u32[]', space=smem, size = 0x4, offset = 0x4, fixed_abs, tag = 'smem constant byte address 0x4 - core index']
  #allocation1 [shape = 'u32[72,128]{1,0:T(1,128)}', space=vmem, size = 0x9000, scoped, tag = 'internal scratch']
  #allocation2 [shape = 'f32[2,8,32]{2,1,0:T(8,128)}', space=vmem, size = 0x2000, scoped, tag = 'scratch operand']
  %s0 = inlined_call_operand.vmem [shape: f32[2,8,32], index: 0, kind: input, shape index: {}]
  %s1 = inlined_call_operand.vmem [shape: f32[2,8,32], index: 1, kind: input, shape index: {}]
  %s2 = inlined_call_operand.vmem [shape: f32[2,8,32], index: 2, kind: input, shape index: {}]
  %s3 = inlined_call_operand.vmem [shape: f32[8,8], index: 3, kind: input, shape index: {}]
  %s4 = inlined_call_operand.vmem [shape: f32[2,1,8], index: 4, kind: input, shape index: {}]
  %s5 = inlined_call_operand.vmem [shape: bf16[2,32,32], index: 5, kind: input, shape index: {}]
  %s6 = inlined_call_operand.vmem [shape: bf16[2,32,32], index: 6, kind: input, shape index: {}]
  %s7 = inlined_call_operand.vmem [shape: bf16[2,32,32], index: 7, kind: input, shape index: {}]
  %s8 = inlined_call_operand.vmem [shape: f32[2,1,32], index: 8, kind: input, shape index: {}]
  %s9 = inlined_call_operand.vmem [shape: f32[2,1,32], index: 9, kind: input, shape index: {}]
  %s10 = inlined_call_operand.vmem [shape: f32[2,1,32], index: 10, kind: input, shape index: {}]
  %s11 = inlined_call_operand.vmem [shape: bf16[2,32,32], index: 11, kind: input, shape index: {}]
  %s12 = inlined_call_operand.vmem [shape: f32[2,1,32], index: 12, kind: input, shape index: {}]
  %s13 = inlined_call_operand.vmem [shape: bf16[2,32,64], index: 13, kind: input, shape index: {}]
  %s14 = inlined_call_operand.vmem [shape: f32[2,1,64], index: 14, kind: input, shape index: {}]
  %s15 = inlined_call_operand.vmem [shape: bf16[2,64,32], index: 15, kind: input, shape index: {}]
  %s16 = inlined_call_operand.vmem [shape: f32[2,1,32], index: 16, kind: input, shape index: {}]
  %s17 = inlined_call_operand.vmem [shape: f32[2,1,32], index: 17, kind: input, shape index: {}]
  %s18 = inlined_call_operand.vmem [shape: f32[2,1,32], index: 18, kind: input, shape index: {}]
  %s19 = inlined_call_operand.vmem [shape: f32[2,1,32], index: 19, kind: input, shape index: {}]
  %s20 = inlined_call_operand.vmem [shape: f32[2,1,32], index: 20, kind: input, shape index: {}]
  %s21 = inlined_call_operand.vmem [shape: f32[2,2,8,32], index: 21, kind: output, shape index: {0}]
  %s22 = inlined_call_operand.vmem [shape: f32[2,2,8,8], index: 22, kind: output, shape index: {1}]
  %23 = xla_tuple %s21, %s22
  %s24 = sld [smem:[#allocation0]]
  $region129: #{cx_encoder_forward.1} parent=0
    _
  %s26 = ssub.s32 1, %s24
  %s27 = scalar_select 0, %s26, %s24
  loop: start=0, step=1, limit=4
  $region2: #{cx_encoder_forward.1} parent=0 // loop_pre_header
    _
  $region3: #{cx_encoder_forward.1} parent=0 // loop_header
    %s29 = sphi 0, %s33
    %p30 = scmp.ge.s32.totalorder %s29, 4
    %s36 = sphi 0, %s48
    %s37 = sphi 0, %s44
    %s38 = sphi 0, %s36
    %s39 = sphi 0, %s37
    %s40 = sphi 0, %s38
    %s41 = sphi 0, %s39
    %s51 = sphi 0, %s53
    %s54 = sphi 0, %s51
    %s55 = sphi 0, %s54
    %s71 = sphi 0, %s55
    %s77 = sphi 0, %s79
    %s80 = sphi 0, %s77
    %s81 = sphi 0, %s80
    %s97 = sphi 0, %s81
    %s103 = sphi 0, %s105
    %s106 = sphi 0, %s103
    %s107 = sphi 0, %s106
    %s123 = sphi 0, %s107
    %s127 = sphi 0, %s127
    %s129 = sphi 0, %s127
    %s130 = sphi 0, %s129
    %s144 = sphi 0, %s130
    %s150 = sphi 0, %s152
    %s153 = sphi 0, %s150
    %s154 = sphi 0, %s153
    %s170 = sphi 0, %s154
    %s176 = sphi 0, %s178
    %s179 = sphi 0, %s176
    %s180 = sphi 0, %s179
    %s196 = sphi 0, %s180
    %s202 = sphi 0, %s204
    %s205 = sphi 0, %s202
    %s206 = sphi 0, %s205
    %s222 = sphi 0, %s206
    %s228 = sphi 0, %s230
    %s231 = sphi 0, %s228
    %s232 = sphi 0, %s231
    %s248 = sphi 0, %s232
    %s254 = sphi 0, %s256
    %s257 = sphi 0, %s254
    %s258 = sphi 0, %s257
    %s274 = sphi 0, %s258
    %s280 = sphi 0, %s282
    %s283 = sphi 0, %s280
    %s284 = sphi 0, %s283
    %s300 = sphi 0, %s284
    %s306 = sphi 0, %s308
    %s309 = sphi 0, %s306
    %s310 = sphi 0, %s309
    %s326 = sphi 0, %s310
    %s332 = sphi 0, %s334
    %s335 = sphi 0, %s332
    %s336 = sphi 0, %s335
    %s352 = sphi 0, %s336
    %s358 = sphi 0, %s360
    %s361 = sphi 0, %s358
    %s362 = sphi 0, %s361
    %s378 = sphi 0, %s362
    %s384 = sphi 0, %s386
    %s387 = sphi 0, %s384
    %s388 = sphi 0, %s387
    %s404 = sphi 0, %s388
    %s410 = sphi 0, %s412
    %s413 = sphi 0, %s410
    %s414 = sphi 0, %s413
    %s430 = sphi 0, %s414
    %s436 = sphi 0, %s438
    %s439 = sphi 0, %s436
    %s440 = sphi 0, %s439
    %s456 = sphi 0, %s440
    %s462 = sphi 0, %s464
    %s465 = sphi 0, %s462
    %s466 = sphi 0, %s465
    %s482 = sphi 0, %s466
    %s488 = sphi 0, %s490
    %s491 = sphi 0, %s488
    %s492 = sphi 0, %s491
    %s508 = sphi 0, %s492
    %s514 = sphi 0, %s516
    %s517 = sphi 0, %s514
    %s518 = sphi 0, %s517
    %s534 = sphi 0, %s518
    %s540 = sphi 0, %s542
    %s543 = sphi 0, %s540
    %s544 = sphi 0, %s543
    %s560 = sphi 0, %s544
    %s566 = sphi 0, %s568
    %s569 = sphi 0, %s566
    %s570 = sphi 0, %s569
    %s586 = sphi 0, %s570
    %s594 = sphi 0, %s596
    %s597 = sphi 0, %s594
    %s598 = sphi 0, %s597
    %s614 = sphi 0, %s598
    %s622 = sphi 0, %s624
    %s625 = sphi 0, %s622
    %s626 = sphi 0, %s625
    %s642 = sphi 0, %s626
  $region4: #{cx_encoder_forward.1} parent=0 // loop_header_branch
    %32 = sbr.rel (%p30) target = $region8
  $region5: #{cx_encoder_forward.1} parent=0 // loop_body
    %s34 = ssub.s32 %s29, 1
    %s35 = ssub.s32 %s29, 2
    %s42 = sadd.s32 1, %s37
    %p43 = scmp.ge.s32.totalorder %s42, 2
    %s44 = scalar_select %p43, 0, %s42
    %s45 = sadd.s32 1, %s36
    %s46 = scalar_select %p43, %s45, %s36
    %p47 = scmp.ge.s32.totalorder %s46, 1
    %s48 = scalar_select %p47, 0, %s46
    %s49 = ssub.s32 %s36, %s48
    %p50 = scmp.eq.s32.totalorder %s49, 0
    %s52 = sadd.s32 %s51, 1
    %s53 = scalar_select %p50, %s51, %s52
    %p56 = pneg %p50
    %p57 = scmp.eq.s32.totalorder %s29, 1
    %p58 = por %p56, %p57
    %p59 = scmp.ne.s32.totalorder %s51, %s54
    %p60 = scmp.eq.s32.totalorder %s29, 0
    %p61 = por %p59, %p60
    %p62 = scmp.ne.s32.totalorder %s51, %s54
    %p63 = scmp.eq.s32.totalorder %s34, 1
    %p64 = por %p62, %p63
    %p65 = scmp.ne.s32.totalorder %s54, %s55
    %p66 = scmp.eq.s32.totalorder %s34, 0
    %p67 = por %p65, %p66
    %p68 = scmp.ne.s32.totalorder %s54, %s55
    %p69 = scmp.eq.s32.totalorder %s35, 1
    %p70 = por %p68, %p69
    %p72 = scmp.ne.s32.totalorder %s55, %s71
    %p73 = scmp.eq.s32.totalorder %s35, 0
    %p74 = por %p72, %p73
    %s75 = ssub.s32 %s36, %s48
    %p76 = scmp.eq.s32.totalorder %s75, 0
    %s78 = sadd.s32 %s77, 1
    %s79 = scalar_select %p76, %s77, %s78
    %p82 = pneg %p76
    %p83 = scmp.eq.s32.totalorder %s29, 1
    %p84 = por %p82, %p83
    %p85 = scmp.ne.s32.totalorder %s77, %s80
    %p86 = scmp.eq.s32.totalorder %s29, 0
    %p87 = por %p85, %p86
    %p88 = scmp.ne.s32.totalorder %s77, %s80
    %p89 = scmp.eq.s32.totalorder %s34, 1
    %p90 = por %p88, %p89
    %p91 = scmp.ne.s32.totalorder %s80, %s81
    %p92 = scmp.eq.s32.totalorder %s34, 0
    %p93 = por %p91, %p92
    %p94 = scmp.ne.s32.totalorder %s80, %s81
    %p95 = scmp.eq.s32.totalorder %s35, 1
    %p96 = por %p94, %p95
    %p98 = scmp.ne.s32.totalorder %s81, %s97
    %p99 = scmp.eq.s32.totalorder %s35, 0
    %p100 = por %p98, %p99
    %s101 = ssub.s32 %s36, %s48
    %p102 = scmp.eq.s32.totalorder %s101, 0
    %s104 = sadd.s32 %s103, 1
    %s105 = scalar_select %p102, %s103, %s104
    %p108 = pneg %p102
    %p109 = scmp.eq.s32.totalorder %s29, 1
    %p110 = por %p108, %p109
    %p111 = scmp.ne.s32.totalorder %s103, %s106
    %p112 = scmp.eq.s32.totalorder %s29, 0
    %p113 = por %p111, %p112
    %p114 = scmp.ne.s32.totalorder %s103, %s106
    %p115 = scmp.eq.s32.totalorder %s34, 1
    %p116 = por %p114, %p115
    %p117 = scmp.ne.s32.totalorder %s106, %s107
    %p118 = scmp.eq.s32.totalorder %s34, 0
    %p119 = por %p117, %p118
    %p120 = scmp.ne.s32.totalorder %s106, %s107
    %p121 = scmp.eq.s32.totalorder %s35, 1
    %p122 = por %p120, %p121
    %p124 = scmp.ne.s32.totalorder %s107, %s123
    %p125 = scmp.eq.s32.totalorder %s35, 0
    %p126 = por %p124, %p125
    %s128 = sadd.s32 %s127, 1
    %p131 = scmp.eq.s32.totalorder %s29, 1
    %p132 = scmp.ne.s32.totalorder %s127, %s129
    %p133 = scmp.eq.s32.totalorder %s29, 0
    %p134 = por %p132, %p133
    %p135 = scmp.ne.s32.totalorder %s127, %s129
    %p136 = scmp.eq.s32.totalorder %s34, 1
    %p137 = por %p135, %p136
    %p138 = scmp.ne.s32.totalorder %s129, %s130
    %p139 = scmp.eq.s32.totalorder %s34, 0
    %p140 = por %p138, %p139
    %p141 = scmp.ne.s32.totalorder %s129, %s130
    %p142 = scmp.eq.s32.totalorder %s35, 1
    %p143 = por %p141, %p142
    %p145 = scmp.ne.s32.totalorder %s130, %s144
    %p146 = scmp.eq.s32.totalorder %s35, 0
    %p147 = por %p145, %p146
    %s148 = ssub.s32 %s36, %s48
    %p149 = scmp.eq.s32.totalorder %s148, 0
    %s151 = sadd.s32 %s150, 1
    %s152 = scalar_select %p149, %s150, %s151
    %p155 = pneg %p149
    %p156 = scmp.eq.s32.totalorder %s29, 1
    %p157 = por %p155, %p156
    %p158 = scmp.ne.s32.totalorder %s150, %s153
    %p159 = scmp.eq.s32.totalorder %s29, 0
    %p160 = por %p158, %p159
    %p161 = scmp.ne.s32.totalorder %s150, %s153
    %p162 = scmp.eq.s32.totalorder %s34, 1
    %p163 = por %p161, %p162
    %p164 = scmp.ne.s32.totalorder %s153, %s154
    %p165 = scmp.eq.s32.totalorder %s34, 0
    %p166 = por %p164, %p165
    %p167 = scmp.ne.s32.totalorder %s153, %s154
    %p168 = scmp.eq.s32.totalorder %s35, 1
    %p169 = por %p167, %p168
    %p171 = scmp.ne.s32.totalorder %s154, %s170
    %p172 = scmp.eq.s32.totalorder %s35, 0
    %p173 = por %p171, %p172
    %s174 = ssub.s32 %s37, %s44
    %p175 = scmp.eq.s32.totalorder %s174, 0
    %s177 = sadd.s32 %s176, 1
    %s178 = scalar_select %p175, %s176, %s177
    %p181 = pneg %p175
    %p182 = scmp.eq.s32.totalorder %s29, 1
    %p183 = por %p181, %p182
    %p184 = scmp.ne.s32.totalorder %s176, %s179
    %p185 = scmp.eq.s32.totalorder %s29, 0
    %p186 = por %p184, %p185
    %p187 = scmp.ne.s32.totalorder %s176, %s179
    %p188 = scmp.eq.s32.totalorder %s34, 1
    %p189 = por %p187, %p188
    %p190 = scmp.ne.s32.totalorder %s179, %s180
    %p191 = scmp.eq.s32.totalorder %s34, 0
    %p192 = por %p190, %p191
    %p193 = scmp.ne.s32.totalorder %s179, %s180
    %p194 = scmp.eq.s32.totalorder %s35, 1
    %p195 = por %p193, %p194
    %p197 = scmp.ne.s32.totalorder %s180, %s196
    %p198 = scmp.eq.s32.totalorder %s35, 0
    %p199 = por %p197, %p198
    %s200 = ssub.s32 %s37, %s44
    %p201 = scmp.eq.s32.totalorder %s200, 0
    %s203 = sadd.s32 %s202, 1
    %s204 = scalar_select %p201, %s202, %s203
    %p207 = pneg %p201
    %p208 = scmp.eq.s32.totalorder %s29, 1
    %p209 = por %p207, %p208
    %p210 = scmp.ne.s32.totalorder %s202, %s205
    %p211 = scmp.eq.s32.totalorder %s29, 0
    %p212 = por %p210, %p211
    %p213 = scmp.ne.s32.totalorder %s202, %s205
    %p214 = scmp.eq.s32.totalorder %s34, 1
    %p215 = por %p213, %p214
    %p216 = scmp.ne.s32.totalorder %s205, %s206
    %p217 = scmp.eq.s32.totalorder %s34, 0
    %p218 = por %p216, %p217
    %p219 = scmp.ne.s32.totalorder %s205, %s206
    %p220 = scmp.eq.s32.totalorder %s35, 1
    %p221 = por %p219, %p220
    %p223 = scmp.ne.s32.totalorder %s206, %s222
    %p224 = scmp.eq.s32.totalorder %s35, 0
    %p225 = por %p223, %p224
    %s226 = ssub.s32 %s37, %s44
    %p227 = scmp.eq.s32.totalorder %s226, 0
    %s229 = sadd.s32 %s228, 1
    %s230 = scalar_select %p227, %s228, %s229
    %p233 = pneg %p227
    %p234 = scmp.eq.s32.totalorder %s29, 1
    %p235 = por %p233, %p234
    %p236 = scmp.ne.s32.totalorder %s228, %s231
    %p237 = scmp.eq.s32.totalorder %s29, 0
    %p238 = por %p236, %p237
    %p239 = scmp.ne.s32.totalorder %s228, %s231
    %p240 = scmp.eq.s32.totalorder %s34, 1
    %p241 = por %p239, %p240
    %p242 = scmp.ne.s32.totalorder %s231, %s232
    %p243 = scmp.eq.s32.totalorder %s34, 0
    %p244 = por %p242, %p243
    %p245 = scmp.ne.s32.totalorder %s231, %s232
    %p246 = scmp.eq.s32.totalorder %s35, 1
    %p247 = por %p245, %p246
    %p249 = scmp.ne.s32.totalorder %s232, %s248
    %p250 = scmp.eq.s32.totalorder %s35, 0
    %p251 = por %p249, %p250
    %s252 = ssub.s32 %s37, %s44
    %p253 = scmp.eq.s32.totalorder %s252, 0
    %s255 = sadd.s32 %s254, 1
    %s256 = scalar_select %p253, %s254, %s255
    %p259 = pneg %p253
    %p260 = scmp.eq.s32.totalorder %s29, 1
    %p261 = por %p259, %p260
    %p262 = scmp.ne.s32.totalorder %s254, %s257
    %p263 = scmp.eq.s32.totalorder %s29, 0
    %p264 = por %p262, %p263
    %p265 = scmp.ne.s32.totalorder %s254, %s257
    %p266 = scmp.eq.s32.totalorder %s34, 1
    %p267 = por %p265, %p266
    %p268 = scmp.ne.s32.totalorder %s257, %s258
    %p269 = scmp.eq.s32.totalorder %s34, 0
    %p270 = por %p268, %p269
    %p271 = scmp.ne.s32.totalorder %s257, %s258
    %p272 = scmp.eq.s32.totalorder %s35, 1
    %p273 = por %p271, %p272
    %p275 = scmp.ne.s32.totalorder %s258, %s274
    %p276 = scmp.eq.s32.totalorder %s35, 0
    %p277 = por %p275, %p276
    %s278 = ssub.s32 %s37, %s44
    %p279 = scmp.eq.s32.totalorder %s278, 0
    %s281 = sadd.s32 %s280, 1
    %s282 = scalar_select %p279, %s280, %s281
    %p285 = pneg %p279
    %p286 = scmp.eq.s32.totalorder %s29, 1
    %p287 = por %p285, %p286
    %p288 = scmp.ne.s32.totalorder %s280, %s283
    %p289 = scmp.eq.s32.totalorder %s29, 0
    %p290 = por %p288, %p289
    %p291 = scmp.ne.s32.totalorder %s280, %s283
    %p292 = scmp.eq.s32.totalorder %s34, 1
    %p293 = por %p291, %p292
    %p294 = scmp.ne.s32.totalorder %s283, %s284
    %p295 = scmp.eq.s32.totalorder %s34, 0
    %p296 = por %p294, %p295
    %p297 = scmp.ne.s32.totalorder %s283, %s284
    %p298 = scmp.eq.s32.totalorder %s35, 1
    %p299 = por %p297, %p298
    %p301 = scmp.ne.s32.totalorder %s284, %s300
    %p302 = scmp.eq.s32.totalorder %s35, 0
    %p303 = por %p301, %p302
    %s304 = ssub.s32 %s37, %s44
    %p305 = scmp.eq.s32.totalorder %s304, 0
    %s307 = sadd.s32 %s306, 1
    %s308 = scalar_select %p305, %s306, %s307
    %p311 = pneg %p305
    %p312 = scmp.eq.s32.totalorder %s29, 1
    %p313 = por %p311, %p312
    %p314 = scmp.ne.s32.totalorder %s306, %s309
    %p315 = scmp.eq.s32.totalorder %s29, 0
    %p316 = por %p314, %p315
    %p317 = scmp.ne.s32.totalorder %s306, %s309
    %p318 = scmp.eq.s32.totalorder %s34, 1
    %p319 = por %p317, %p318
    %p320 = scmp.ne.s32.totalorder %s309, %s310
    %p321 = scmp.eq.s32.totalorder %s34, 0
    %p322 = por %p320, %p321
    %p323 = scmp.ne.s32.totalorder %s309, %s310
    %p324 = scmp.eq.s32.totalorder %s35, 1
    %p325 = por %p323, %p324
    %p327 = scmp.ne.s32.totalorder %s310, %s326
    %p328 = scmp.eq.s32.totalorder %s35, 0
    %p329 = por %p327, %p328
    %s330 = ssub.s32 %s37, %s44
    %p331 = scmp.eq.s32.totalorder %s330, 0
    %s333 = sadd.s32 %s332, 1
    %s334 = scalar_select %p331, %s332, %s333
    %p337 = pneg %p331
    %p338 = scmp.eq.s32.totalorder %s29, 1
    %p339 = por %p337, %p338
    %p340 = scmp.ne.s32.totalorder %s332, %s335
    %p341 = scmp.eq.s32.totalorder %s29, 0
    %p342 = por %p340, %p341
    %p343 = scmp.ne.s32.totalorder %s332, %s335
    %p344 = scmp.eq.s32.totalorder %s34, 1
    %p345 = por %p343, %p344
    %p346 = scmp.ne.s32.totalorder %s335, %s336
    %p347 = scmp.eq.s32.totalorder %s34, 0
    %p348 = por %p346, %p347
    %p349 = scmp.ne.s32.totalorder %s335, %s336
    %p350 = scmp.eq.s32.totalorder %s35, 1
    %p351 = por %p349, %p350
    %p353 = scmp.ne.s32.totalorder %s336, %s352
    %p354 = scmp.eq.s32.totalorder %s35, 0
    %p355 = por %p353, %p354
    %s356 = ssub.s32 %s37, %s44
    %p357 = scmp.eq.s32.totalorder %s356, 0
    %s359 = sadd.s32 %s358, 1
    %s360 = scalar_select %p357, %s358, %s359
    %p363 = pneg %p357
    %p364 = scmp.eq.s32.totalorder %s29, 1
    %p365 = por %p363, %p364
    %p366 = scmp.ne.s32.totalorder %s358, %s361
    %p367 = scmp.eq.s32.totalorder %s29, 0
    %p368 = por %p366, %p367
    %p369 = scmp.ne.s32.totalorder %s358, %s361
    %p370 = scmp.eq.s32.totalorder %s34, 1
    %p371 = por %p369, %p370
    %p372 = scmp.ne.s32.totalorder %s361, %s362
    %p373 = scmp.eq.s32.totalorder %s34, 0
    %p374 = por %p372, %p373
    %p375 = scmp.ne.s32.totalorder %s361, %s362
    %p376 = scmp.eq.s32.totalorder %s35, 1
    %p377 = por %p375, %p376
    %p379 = scmp.ne.s32.totalorder %s362, %s378
    %p380 = scmp.eq.s32.totalorder %s35, 0
    %p381 = por %p379, %p380
    %s382 = ssub.s32 %s37, %s44
    %p383 = scmp.eq.s32.totalorder %s382, 0
    %s385 = sadd.s32 %s384, 1
    %s386 = scalar_select %p383, %s384, %s385
    %p389 = pneg %p383
    %p390 = scmp.eq.s32.totalorder %s29, 1
    %p391 = por %p389, %p390
    %p392 = scmp.ne.s32.totalorder %s384, %s387
    %p393 = scmp.eq.s32.totalorder %s29, 0
    %p394 = por %p392, %p393
    %p395 = scmp.ne.s32.totalorder %s384, %s387
    %p396 = scmp.eq.s32.totalorder %s34, 1
    %p397 = por %p395, %p396
    %p398 = scmp.ne.s32.totalorder %s387, %s388
    %p399 = scmp.eq.s32.totalorder %s34, 0
    %p400 = por %p398, %p399
    %p401 = scmp.ne.s32.totalorder %s387, %s388
    %p402 = scmp.eq.s32.totalorder %s35, 1
    %p403 = por %p401, %p402
    %p405 = scmp.ne.s32.totalorder %s388, %s404
    %p406 = scmp.eq.s32.totalorder %s35, 0
    %p407 = por %p405, %p406
    %s408 = ssub.s32 %s37, %s44
    %p409 = scmp.eq.s32.totalorder %s408, 0
    %s411 = sadd.s32 %s410, 1
    %s412 = scalar_select %p409, %s410, %s411
    %p415 = pneg %p409
    %p416 = scmp.eq.s32.totalorder %s29, 1
    %p417 = por %p415, %p416
    %p418 = scmp.ne.s32.totalorder %s410, %s413
    %p419 = scmp.eq.s32.totalorder %s29, 0
    %p420 = por %p418, %p419
    %p421 = scmp.ne.s32.totalorder %s410, %s413
    %p422 = scmp.eq.s32.totalorder %s34, 1
    %p423 = por %p421, %p422
    %p424 = scmp.ne.s32.totalorder %s413, %s414
    %p425 = scmp.eq.s32.totalorder %s34, 0
    %p426 = por %p424, %p425
    %p427 = scmp.ne.s32.totalorder %s413, %s414
    %p428 = scmp.eq.s32.totalorder %s35, 1
    %p429 = por %p427, %p428
    %p431 = scmp.ne.s32.totalorder %s414, %s430
    %p432 = scmp.eq.s32.totalorder %s35, 0
    %p433 = por %p431, %p432
    %s434 = ssub.s32 %s37, %s44
    %p435 = scmp.eq.s32.totalorder %s434, 0
    %s437 = sadd.s32 %s436, 1
    %s438 = scalar_select %p435, %s436, %s437
    %p441 = pneg %p435
    %p442 = scmp.eq.s32.totalorder %s29, 1
    %p443 = por %p441, %p442
    %p444 = scmp.ne.s32.totalorder %s436, %s439
    %p445 = scmp.eq.s32.totalorder %s29, 0
    %p446 = por %p444, %p445
    %p447 = scmp.ne.s32.totalorder %s436, %s439
    %p448 = scmp.eq.s32.totalorder %s34, 1
    %p449 = por %p447, %p448
    %p450 = scmp.ne.s32.totalorder %s439, %s440
    %p451 = scmp.eq.s32.totalorder %s34, 0
    %p452 = por %p450, %p451
    %p453 = scmp.ne.s32.totalorder %s439, %s440
    %p454 = scmp.eq.s32.totalorder %s35, 1
    %p455 = por %p453, %p454
    %p457 = scmp.ne.s32.totalorder %s440, %s456
    %p458 = scmp.eq.s32.totalorder %s35, 0
    %p459 = por %p457, %p458
    %s460 = ssub.s32 %s37, %s44
    %p461 = scmp.eq.s32.totalorder %s460, 0
    %s463 = sadd.s32 %s462, 1
    %s464 = scalar_select %p461, %s462, %s463
    %p467 = pneg %p461
    %p468 = scmp.eq.s32.totalorder %s29, 1
    %p469 = por %p467, %p468
    %p470 = scmp.ne.s32.totalorder %s462, %s465
    %p471 = scmp.eq.s32.totalorder %s29, 0
    %p472 = por %p470, %p471
    %p473 = scmp.ne.s32.totalorder %s462, %s465
    %p474 = scmp.eq.s32.totalorder %s34, 1
    %p475 = por %p473, %p474
    %p476 = scmp.ne.s32.totalorder %s465, %s466
    %p477 = scmp.eq.s32.totalorder %s34, 0
    %p478 = por %p476, %p477
    %p479 = scmp.ne.s32.totalorder %s465, %s466
    %p480 = scmp.eq.s32.totalorder %s35, 1
    %p481 = por %p479, %p480
    %p483 = scmp.ne.s32.totalorder %s466, %s482
    %p484 = scmp.eq.s32.totalorder %s35, 0
    %p485 = por %p483, %p484
    %s486 = ssub.s32 %s37, %s44
    %p487 = scmp.eq.s32.totalorder %s486, 0
    %s489 = sadd.s32 %s488, 1
    %s490 = scalar_select %p487, %s488, %s489
    %p493 = pneg %p487
    %p494 = scmp.eq.s32.totalorder %s29, 1
    %p495 = por %p493, %p494
    %p496 = scmp.ne.s32.totalorder %s488, %s491
    %p497 = scmp.eq.s32.totalorder %s29, 0
    %p498 = por %p496, %p497
    %p499 = scmp.ne.s32.totalorder %s488, %s491
    %p500 = scmp.eq.s32.totalorder %s34, 1
    %p501 = por %p499, %p500
    %p502 = scmp.ne.s32.totalorder %s491, %s492
    %p503 = scmp.eq.s32.totalorder %s34, 0
    %p504 = por %p502, %p503
    %p505 = scmp.ne.s32.totalorder %s491, %s492
    %p506 = scmp.eq.s32.totalorder %s35, 1
    %p507 = por %p505, %p506
    %p509 = scmp.ne.s32.totalorder %s492, %s508
    %p510 = scmp.eq.s32.totalorder %s35, 0
    %p511 = por %p509, %p510
    %s512 = ssub.s32 %s37, %s44
    %p513 = scmp.eq.s32.totalorder %s512, 0
    %s515 = sadd.s32 %s514, 1
    %s516 = scalar_select %p513, %s514, %s515
    %p519 = pneg %p513
    %p520 = scmp.eq.s32.totalorder %s29, 1
    %p521 = por %p519, %p520
    %p522 = scmp.ne.s32.totalorder %s514, %s517
    %p523 = scmp.eq.s32.totalorder %s29, 0
    %p524 = por %p522, %p523
    %p525 = scmp.ne.s32.totalorder %s514, %s517
    %p526 = scmp.eq.s32.totalorder %s34, 1
    %p527 = por %p525, %p526
    %p528 = scmp.ne.s32.totalorder %s517, %s518
    %p529 = scmp.eq.s32.totalorder %s34, 0
    %p530 = por %p528, %p529
    %p531 = scmp.ne.s32.totalorder %s517, %s518
    %p532 = scmp.eq.s32.totalorder %s35, 1
    %p533 = por %p531, %p532
    %p535 = scmp.ne.s32.totalorder %s518, %s534
    %p536 = scmp.eq.s32.totalorder %s35, 0
    %p537 = por %p535, %p536
    %s538 = ssub.s32 %s37, %s44
    %p539 = scmp.eq.s32.totalorder %s538, 0
    %s541 = sadd.s32 %s540, 1
    %s542 = scalar_select %p539, %s540, %s541
    %p545 = pneg %p539
    %p546 = scmp.eq.s32.totalorder %s29, 1
    %p547 = por %p545, %p546
    %p548 = scmp.ne.s32.totalorder %s540, %s543
    %p549 = scmp.eq.s32.totalorder %s29, 0
    %p550 = por %p548, %p549
    %p551 = scmp.ne.s32.totalorder %s540, %s543
    %p552 = scmp.eq.s32.totalorder %s34, 1
    %p553 = por %p551, %p552
    %p554 = scmp.ne.s32.totalorder %s543, %s544
    %p555 = scmp.eq.s32.totalorder %s34, 0
    %p556 = por %p554, %p555
    %p557 = scmp.ne.s32.totalorder %s543, %s544
    %p558 = scmp.eq.s32.totalorder %s35, 1
    %p559 = por %p557, %p558
    %p561 = scmp.ne.s32.totalorder %s544, %s560
    %p562 = scmp.eq.s32.totalorder %s35, 0
    %p563 = por %p561, %p562
    %s564 = ssub.s32 %s37, %s44
    %p565 = scmp.eq.s32.totalorder %s564, 0
    %s567 = sadd.s32 %s566, 1
    %s568 = scalar_select %p565, %s566, %s567
    %p571 = pneg %p565
    %p572 = scmp.eq.s32.totalorder %s29, 1
    %p573 = por %p571, %p572
    %p574 = scmp.ne.s32.totalorder %s566, %s569
    %p575 = scmp.eq.s32.totalorder %s29, 0
    %p576 = por %p574, %p575
    %p577 = scmp.ne.s32.totalorder %s566, %s569
    %p578 = scmp.eq.s32.totalorder %s34, 1
    %p579 = por %p577, %p578
    %p580 = scmp.ne.s32.totalorder %s569, %s570
    %p581 = scmp.eq.s32.totalorder %s34, 0
    %p582 = por %p580, %p581
    %p583 = scmp.ne.s32.totalorder %s569, %s570
    %p584 = scmp.eq.s32.totalorder %s35, 1
    %p585 = por %p583, %p584
    %p587 = scmp.ne.s32.totalorder %s570, %s586
    %p588 = scmp.eq.s32.totalorder %s35, 0
    %p589 = por %p587, %p588
    %s590 = ssub.s32 %s37, %s44
    %s591 = ssub.s32 %s36, %s48
    %s592 = sor.u32 %s590, %s591
    %p593 = scmp.eq.s32.totalorder %s592, 0
    %s595 = sadd.s32 %s594, 1
    %s596 = scalar_select %p593, %s594, %s595
    %p599 = pneg %p593
    %p600 = scmp.eq.s32.totalorder %s29, 1
    %p601 = por %p599, %p600
    %p602 = scmp.ne.s32.totalorder %s594, %s597
    %p603 = scmp.eq.s32.totalorder %s29, 0
    %p604 = por %p602, %p603
    %p605 = scmp.ne.s32.totalorder %s594, %s597
    %p606 = scmp.eq.s32.totalorder %s34, 1
    %p607 = por %p605, %p606
    %p608 = scmp.ne.s32.totalorder %s597, %s598
    %p609 = scmp.eq.s32.totalorder %s34, 0
    %p610 = por %p608, %p609
    %p611 = scmp.ne.s32.totalorder %s597, %s598
    %p612 = scmp.eq.s32.totalorder %s35, 1
    %p613 = por %p611, %p612
    %p615 = scmp.ne.s32.totalorder %s598, %s614
    %p616 = scmp.eq.s32.totalorder %s35, 0
    %p617 = por %p615, %p616
    %s618 = ssub.s32 %s37, %s44
    %s619 = ssub.s32 %s36, %s48
    %s620 = sor.u32 %s618, %s619
    %p621 = scmp.eq.s32.totalorder %s620, 0
    %s623 = sadd.s32 %s622, 1
    %s624 = scalar_select %p621, %s622, %s623
    %p627 = pneg %p621
    %p628 = scmp.eq.s32.totalorder %s29, 1
    %p629 = por %p627, %p628
    %p630 = scmp.ne.s32.totalorder %s622, %s625
    %p631 = scmp.eq.s32.totalorder %s29, 0
    %p632 = por %p630, %p631
    %p633 = scmp.ne.s32.totalorder %s622, %s625
    %p634 = scmp.eq.s32.totalorder %s34, 1
    %p635 = por %p633, %p634
    %p636 = scmp.ne.s32.totalorder %s625, %s626
    %p637 = scmp.eq.s32.totalorder %s34, 0
    %p638 = por %p636, %p637
    %p639 = scmp.ne.s32.totalorder %s625, %s626
    %p640 = scmp.eq.s32.totalorder %s35, 1
    %p641 = por %p639, %p640
    %p643 = scmp.ne.s32.totalorder %s626, %s642
    %p644 = scmp.eq.s32.totalorder %s35, 0
    %p645 = por %p643, %p644
    %p646 = scmp.le.s32.totalorder 1, %s29
    %p647 = scmp.lt.s32.totalorder %s29, 3
    %p648 = pnand %p646, %p647
    %p649 = pneg %p648
    // Predicated region
    $region9: #{cx_encoder_forward.1} parent=5 // pred_check
      _
    $region10: #{cx_encoder_forward.1} parent=5 // pred_check_branch
      %651 = sbr.rel (%p648) target = $region12
    $region11: #{cx_encoder_forward.1} parent=5 // pred_region
      %s652 = ssub.s32 %s29, 1
      // Predicated region
      $region13: #{cx_encoder_forward.1} parent=11 // pred_check
        %p653 = pneg %p67
      $region14: #{cx_encoder_forward.1} parent=11 // pred_check_branch
        %655 = sbr.rel (%p653) target = $region16
      $region15: #{cx_encoder_forward.1} parent=11 // pred_region
        %s656 = smul.u32 2, %s38
        %p657 = scmp.lt.s32.totalorder %s656, 1
        %s658 = scalar_select %p657, %s656, 1
        %s659 = smul.addr %s658, 8
        %s660 = scalar_lea.vmem %s0, %s659
        %s661 = smul.u32 2, %s38
      $region16: #{cx_encoder_forward.1} parent=11 // pred_fallthru
        _
      // Predicated region
      $region17: #{cx_encoder_forward.1} parent=11 // pred_check
        %p662 = pneg %p93
      $region18: #{cx_encoder_forward.1} parent=11 // pred_check_branch
        %664 = sbr.rel (%p662) target = $region20
      $region19: #{cx_encoder_forward.1} parent=11 // pred_region
        %s665 = smul.u32 2, %s38
        %p666 = scmp.lt.s32.totalorder %s665, 1
        %s667 = scalar_select %p666, %s665, 1
        %s668 = smul.addr %s667, 8
        %s669 = scalar_lea.vmem %s1, %s668
        %s670 = smul.u32 2, %s38
      $region20: #{cx_encoder_forward.1} parent=11 // pred_fallthru
        _
      // Predicated region
      $region21: #{cx_encoder_forward.1} parent=11 // pred_check
        %p671 = pneg %p119
      $region22: #{cx_encoder_forward.1} parent=11 // pred_check_branch
        %673 = sbr.rel (%p671) target = $region24
      $region23: #{cx_encoder_forward.1} parent=11 // pred_region
        %s674 = smul.u32 2, %s38
        %p675 = scmp.lt.s32.totalorder %s674, 1
        %s676 = scalar_select %p675, %s674, 1
        %s677 = smul.addr %s676, 8
        %s678 = scalar_lea.vmem %s2, %s677
        %s679 = smul.u32 2, %s38
      $region24: #{cx_encoder_forward.1} parent=11 // pred_fallthru
        _
      // Predicated region
      $region25: #{cx_encoder_forward.1} parent=11 // pred_check
        %p680 = pneg %p140
      $region26: #{cx_encoder_forward.1} parent=11 // pred_check_branch
        %682 = sbr.rel (%p680) target = $region28
      $region27: #{cx_encoder_forward.1} parent=11 // pred_region
        _
      $region28: #{cx_encoder_forward.1} parent=11 // pred_fallthru
        _
      // Predicated region
      $region29: #{cx_encoder_forward.1} parent=11 // pred_check
        %p683 = pneg %p166
      $region30: #{cx_encoder_forward.1} parent=11 // pred_check_branch
        %685 = sbr.rel (%p683) target = $region32
      $region31: #{cx_encoder_forward.1} parent=11 // pred_region
        %s686 = smul.u32 2, %s38
        %p687 = scmp.lt.s32.totalorder %s686, 1
        %s688 = scalar_select %p687, %s686, 1
        %s689 = scalar_lea.vmem %s4, %s688
        %s690 = smul.u32 2, %s38
      $region32: #{cx_encoder_forward.1} parent=11 // pred_fallthru
        _
    $region12: #{cx_encoder_forward.1} parent=5 // pred_fallthru
      _
    %p691 = scmp.lt.s32.totalorder %s29, 2
    // Predicated region
    $region33: #{cx_encoder_forward.1} parent=5 // pred_check
      %p692 = pneg %p691
    $region34: #{cx_encoder_forward.1} parent=5 // pred_check_branch
      %694 = sbr.rel (%p692) target = $region36
    $region35: #{cx_encoder_forward.1} parent=5 // pred_region
      // Predicated region
      $region37: #{cx_encoder_forward.1} parent=35 // pred_check
        %p695 = pneg %p186
      $region38: #{cx_encoder_forward.1} parent=35 // pred_check_branch
        %697 = sbr.rel (%p695) target = $region40
      $region39: #{cx_encoder_forward.1} parent=35 // pred_region
        %p698 = scmp.lt.s32.totalorder %s37, 1
        %s699 = scalar_select %p698, %s37, 1
        %s700 = smul.addr %s699, 4
        %s701 = smul.addr %s700, 4
        %s702 = scalar_lea.vmem %s5, %s701
      $region40: #{cx_encoder_forward.1} parent=35 // pred_fallthru
        _
      // Predicated region
      $region41: #{cx_encoder_forward.1} parent=35 // pred_check
        %p703 = pneg %p212
      $region42: #{cx_encoder_forward.1} parent=35 // pred_check_branch
        %705 = sbr.rel (%p703) target = $region44
      $region43: #{cx_encoder_forward.1} parent=35 // pred_region
        %p706 = scmp.lt.s32.totalorder %s37, 1
        %s707 = scalar_select %p706, %s37, 1
        %s708 = smul.addr %s707, 4
        %s709 = smul.addr %s708, 4
        %s710 = scalar_lea.vmem %s6, %s709
      $region44: #{cx_encoder_forward.1} parent=35 // pred_fallthru
        _
      // Predicated region
      $region45: #{cx_encoder_forward.1} parent=35 // pred_check
        %p711 = pneg %p238
      $region46: #{cx_encoder_forward.1} parent=35 // pred_check_branch
        %713 = sbr.rel (%p711) target = $region48
      $region47: #{cx_encoder_forward.1} parent=35 // pred_region
        %p714 = scmp.lt.s32.totalorder %s37, 1
        %s715 = scalar_select %p714, %s37, 1
        %s716 = smul.addr %s715, 4
        %s717 = smul.addr %s716, 4
        %s718 = scalar_lea.vmem %s7, %s717
      $region48: #{cx_encoder_forward.1} parent=35 // pred_fallthru
        _
      // Predicated region
      $region49: #{cx_encoder_forward.1} parent=35 // pred_check
        %p719 = pneg %p264
      $region50: #{cx_encoder_forward.1} parent=35 // pred_check_branch
        %721 = sbr.rel (%p719) target = $region52
      $region51: #{cx_encoder_forward.1} parent=35 // pred_region
        %p722 = scmp.lt.s32.totalorder %s37, 1
        %s723 = scalar_select %p722, %s37, 1
        %s724 = scalar_lea.vmem %s8, %s723
      $region52: #{cx_encoder_forward.1} parent=35 // pred_fallthru
        _
      // Predicated region
      $region53: #{cx_encoder_forward.1} parent=35 // pred_check
        %p725 = pneg %p290
      $region54: #{cx_encoder_forward.1} parent=35 // pred_check_branch
        %727 = sbr.rel (%p725) target = $region56
      $region55: #{cx_encoder_forward.1} parent=35 // pred_region
        %p728 = scmp.lt.s32.totalorder %s37, 1
        %s729 = scalar_select %p728, %s37, 1
        %s730 = scalar_lea.vmem %s9, %s729
      $region56: #{cx_encoder_forward.1} parent=35 // pred_fallthru
        _
      // Predicated region
      $region57: #{cx_encoder_forward.1} parent=35 // pred_check
        %p731 = pneg %p316
      $region58: #{cx_encoder_forward.1} parent=35 // pred_check_branch
        %733 = sbr.rel (%p731) target = $region60
      $region59: #{cx_encoder_forward.1} parent=35 // pred_region
        %p734 = scmp.lt.s32.totalorder %s37, 1
        %s735 = scalar_select %p734, %s37, 1
        %s736 = scalar_lea.vmem %s10, %s735
      $region60: #{cx_encoder_forward.1} parent=35 // pred_fallthru
        _
      // Predicated region
      $region61: #{cx_encoder_forward.1} parent=35 // pred_check
        %p737 = pneg %p342
      $region62: #{cx_encoder_forward.1} parent=35 // pred_check_branch
        %739 = sbr.rel (%p737) target = $region64
      $region63: #{cx_encoder_forward.1} parent=35 // pred_region
        %p740 = scmp.lt.s32.totalorder %s37, 1
        %s741 = scalar_select %p740, %s37, 1
        %s742 = smul.addr %s741, 4
        %s743 = smul.addr %s742, 4
        %s744 = scalar_lea.vmem %s11, %s743
      $region64: #{cx_encoder_forward.1} parent=35 // pred_fallthru
        _
      // Predicated region
      $region65: #{cx_encoder_forward.1} parent=35 // pred_check
        %p745 = pneg %p368
      $region66: #{cx_encoder_forward.1} parent=35 // pred_check_branch
        %747 = sbr.rel (%p745) target = $region68
      $region67: #{cx_encoder_forward.1} parent=35 // pred_region
        %p748 = scmp.lt.s32.totalorder %s37, 1
        %s749 = scalar_select %p748, %s37, 1
        %s750 = scalar_lea.vmem %s12, %s749
      $region68: #{cx_encoder_forward.1} parent=35 // pred_fallthru
        _
      // Predicated region
      $region69: #{cx_encoder_forward.1} parent=35 // pred_check
        %p751 = pneg %p394
      $region70: #{cx_encoder_forward.1} parent=35 // pred_check_branch
        %753 = sbr.rel (%p751) target = $region72
      $region71: #{cx_encoder_forward.1} parent=35 // pred_region
        %p754 = scmp.lt.s32.totalorder %s37, 1
        %s755 = scalar_select %p754, %s37, 1
        %s756 = smul.addr %s755, 4
        %s757 = smul.addr %s756, 4
        %s758 = scalar_lea.vmem %s13, %s757
      $region72: #{cx_encoder_forward.1} parent=35 // pred_fallthru
        _
      // Predicated region
      $region73: #{cx_encoder_forward.1} parent=35 // pred_check
        %p759 = pneg %p420
      $region74: #{cx_encoder_forward.1} parent=35 // pred_check_branch
        %761 = sbr.rel (%p759) target = $region76
      $region75: #{cx_encoder_forward.1} parent=35 // pred_region
        %p762 = scmp.lt.s32.totalorder %s37, 1
        %s763 = scalar_select %p762, %s37, 1
        %s764 = scalar_lea.vmem %s14, %s763
      $region76: #{cx_encoder_forward.1} parent=35 // pred_fallthru
        _
      // Predicated region
      $region77: #{cx_encoder_forward.1} parent=35 // pred_check
        %p765 = pneg %p446
      $region78: #{cx_encoder_forward.1} parent=35 // pred_check_branch
        %767 = sbr.rel (%p765) target = $region80
      $region79: #{cx_encoder_forward.1} parent=35 // pred_region
        %p768 = scmp.lt.s32.totalorder %s37, 1
        %s769 = scalar_select %p768, %s37, 1
        %s770 = smul.addr %s769, 8
        %s771 = smul.addr %s770, 4
        %s772 = scalar_lea.vmem %s15, %s771
      $region80: #{cx_encoder_forward.1} parent=35 // pred_fallthru
        _
      // Predicated region
      $region81: #{cx_encoder_forward.1} parent=35 // pred_check
        %p773 = pneg %p472
      $region82: #{cx_encoder_forward.1} parent=35 // pred_check_branch
        %775 = sbr.rel (%p773) target = $region84
      $region83: #{cx_encoder_forward.1} parent=35 // pred_region
        %p776 = scmp.lt.s32.totalorder %s37, 1
        %s777 = scalar_select %p776, %s37, 1
        %s778 = scalar_lea.vmem %s16, %s777
      $region84: #{cx_encoder_forward.1} parent=35 // pred_fallthru
        _
      // Predicated region
      $region85: #{cx_encoder_forward.1} parent=35 // pred_check
        %p779 = pneg %p498
      $region86: #{cx_encoder_forward.1} parent=35 // pred_check_branch
        %781 = sbr.rel (%p779) target = $region88
      $region87: #{cx_encoder_forward.1} parent=35 // pred_region
        %p782 = scmp.lt.s32.totalorder %s37, 1
        %s783 = scalar_select %p782, %s37, 1
        %s784 = scalar_lea.vmem %s17, %s783
      $region88: #{cx_encoder_forward.1} parent=35 // pred_fallthru
        _
      // Predicated region
      $region89: #{cx_encoder_forward.1} parent=35 // pred_check
        %p785 = pneg %p524
      $region90: #{cx_encoder_forward.1} parent=35 // pred_check_branch
        %787 = sbr.rel (%p785) target = $region92
      $region91: #{cx_encoder_forward.1} parent=35 // pred_region
        %p788 = scmp.lt.s32.totalorder %s37, 1
        %s789 = scalar_select %p788, %s37, 1
        %s790 = scalar_lea.vmem %s18, %s789
      $region92: #{cx_encoder_forward.1} parent=35 // pred_fallthru
        _
      // Predicated region
      $region93: #{cx_encoder_forward.1} parent=35 // pred_check
        %p791 = pneg %p550
      $region94: #{cx_encoder_forward.1} parent=35 // pred_check_branch
        %793 = sbr.rel (%p791) target = $region96
      $region95: #{cx_encoder_forward.1} parent=35 // pred_region
        %p794 = scmp.lt.s32.totalorder %s37, 1
        %s795 = scalar_select %p794, %s37, 1
        %s796 = scalar_lea.vmem %s19, %s795
      $region96: #{cx_encoder_forward.1} parent=35 // pred_fallthru
        _
      // Predicated region
      $region97: #{cx_encoder_forward.1} parent=35 // pred_check
        %p797 = pneg %p576
      $region98: #{cx_encoder_forward.1} parent=35 // pred_check_branch
        %799 = sbr.rel (%p797) target = $region100
      $region99: #{cx_encoder_forward.1} parent=35 // pred_region
        %p800 = scmp.lt.s32.totalorder %s37, 1
        %s801 = scalar_select %p800, %s37, 1
        %s802 = scalar_lea.vmem %s20, %s801
      $region100: #{cx_encoder_forward.1} parent=35 // pred_fallthru
        _
    $region36: #{cx_encoder_forward.1} parent=5 // pred_fallthru
      _
    %p803 = scmp.le.s32.totalorder 1, %s29
    %p804 = scmp.lt.s32.totalorder %s29, 3
    %p805 = pnand %p803, %p804
    %p806 = pneg %p805
    // Predicated region
    $region101: #{cx_encoder_forward.1} parent=5 // pred_check
      _
    $region102: #{cx_encoder_forward.1} parent=5 // pred_check_branch
      %808 = sbr.rel (%p805) target = $region104
    $region103: #{cx_encoder_forward.1} parent=5 // pred_region
      %s809 = ssub.s32 %s29, 1
      %s810 = smul.u32 2, %s38
      %p811 = scmp.lt.s32.totalorder %s810, 1
      %s812 = scalar_select %p811, %s810, 1
      %s813 = smul.addr %s812, 8
      %s814 = scalar_lea.vmem %s0, %s813
      %p815 = pneg %p67
      %p816 = pneg %p64
      %s817 = smul.u32 2, %s38
      %p818 = scmp.lt.s32.totalorder %s817, 1
      %s819 = scalar_select %p818, %s817, 1
      %s820 = smul.addr %s819, 8
      %s821 = scalar_lea.vmem %s1, %s820
      %p822 = pneg %p93
      %p823 = pneg %p90
      %s824 = smul.u32 2, %s38
      %p825 = scmp.lt.s32.totalorder %s824, 1
      %s826 = scalar_select %p825, %s824, 1
      %s827 = smul.addr %s826, 8
      %s828 = scalar_lea.vmem %s2, %s827
      %p829 = pneg %p119
      %p830 = pneg %p116
      %p831 = pneg %p140
      %p832 = pneg %p137
      %s833 = smul.u32 2, %s38
      %p834 = scmp.lt.s32.totalorder %s833, 1
      %s835 = scalar_select %p834, %s833, 1
      %s836 = scalar_lea.vmem %s4, %s835
      %p837 = pneg %p166
      %p838 = pneg %p163
      %p839 = scmp.lt.s32.totalorder %s39, 1
      %s840 = scalar_select %p839, %s39, 1
      %s841 = smul.addr %s840, 4
      %s842 = smul.addr %s841, 4
      %s843 = scalar_lea.vmem %s5, %s842
      %p844 = pneg %p192
      %p845 = pneg %p189
      %p846 = scmp.lt.s32.totalorder %s39, 1
      %s847 = scalar_select %p846, %s39, 1
      %s848 = smul.addr %s847, 4
      %s849 = smul.addr %s848, 4
      %s850 = scalar_lea.vmem %s6, %s849
      %p851 = pneg %p218
      %p852 = pneg %p215
      %p853 = scmp.lt.s32.totalorder %s39, 1
      %s854 = scalar_select %p853, %s39, 1
      %s855 = smul.addr %s854, 4
      %s856 = smul.addr %s855, 4
      %s857 = scalar_lea.vmem %s7, %s856
      %p858 = pneg %p244
      %p859 = pneg %p241
      %p860 = scmp.lt.s32.totalorder %s39, 1
      %s861 = scalar_select %p860, %s39, 1
      %s862 = scalar_lea.vmem %s8, %s861
      %p863 = pneg %p270
      %p864 = pneg %p267
      %p865 = scmp.lt.s32.totalorder %s39, 1
      %s866 = scalar_select %p865, %s39, 1
      %s867 = scalar_lea.vmem %s9, %s866
      %p868 = pneg %p296
      %p869 = pneg %p293
      %p870 = scmp.lt.s32.totalorder %s39, 1
      %s871 = scalar_select %p870, %s39, 1
      %s872 = scalar_lea.vmem %s10, %s871
      %p873 = pneg %p322
      %p874 = pneg %p319
      %p875 = scmp.lt.s32.totalorder %s39, 1
      %s876 = scalar_select %p875, %s39, 1
      %s877 = smul.addr %s876, 4
      %s878 = smul.addr %s877, 4
      %s879 = scalar_lea.vmem %s11, %s878
      %p880 = pneg %p348
      %p881 = pneg %p345
      %p882 = scmp.lt.s32.totalorder %s39, 1
      %s883 = scalar_select %p882, %s39, 1
      %s884 = scalar_lea.vmem %s12, %s883
      %p885 = pneg %p374
      %p886 = pneg %p371
      %p887 = scmp.lt.s32.totalorder %s39, 1
      %s888 = scalar_select %p887, %s39, 1
      %s889 = smul.addr %s888, 4
      %s890 = smul.addr %s889, 4
      %s891 = scalar_lea.vmem %s13, %s890
      %p892 = pneg %p400
      %p893 = pneg %p397
      %p894 = scmp.lt.s32.totalorder %s39, 1
      %s895 = scalar_select %p894, %s39, 1
      %s896 = scalar_lea.vmem %s14, %s895
      %p897 = pneg %p426
      %p898 = pneg %p423
      %p899 = scmp.lt.s32.totalorder %s39, 1
      %s900 = scalar_select %p899, %s39, 1
      %s901 = smul.addr %s900, 8
      %s902 = smul.addr %s901, 4
      %s903 = scalar_lea.vmem %s15, %s902
      %p904 = pneg %p452
      %p905 = pneg %p449
      %p906 = scmp.lt.s32.totalorder %s39, 1
      %s907 = scalar_select %p906, %s39, 1
      %s908 = scalar_lea.vmem %s16, %s907
      %p909 = pneg %p478
      %p910 = pneg %p475
      %p911 = scmp.lt.s32.totalorder %s39, 1
      %s912 = scalar_select %p911, %s39, 1
      %s913 = scalar_lea.vmem %s17, %s912
      %p914 = pneg %p504
      %p915 = pneg %p501
      %p916 = scmp.lt.s32.totalorder %s39, 1
      %s917 = scalar_select %p916, %s39, 1
      %s918 = scalar_lea.vmem %s18, %s917
      %p919 = pneg %p530
      %p920 = pneg %p527
      %p921 = scmp.lt.s32.totalorder %s39, 1
      %s922 = scalar_select %p921, %s39, 1
      %s923 = scalar_lea.vmem %s19, %s922
      %p924 = pneg %p556
      %p925 = pneg %p553
      %p926 = scmp.lt.s32.totalorder %s39, 1
      %s927 = scalar_select %p926, %s39, 1
      %s928 = scalar_lea.vmem %s20, %s927
      %p929 = pneg %p582
      %p930 = pneg %p579
      %p931 = pneg %p610
      %p932 = pneg %p607
      %s933 = smul.u32 2, %s38
      %p934 = scmp.lt.s32.totalorder %s39, 1
      %s935 = scalar_select %p934, %s39, 1
      %p936 = scmp.lt.s32.totalorder %s933, 1
      %s937 = scalar_select %p936, %s933, 1
      %s938 = smul.addr %s935, 2
      %s939 = sadd.s32 %s937, %s938
      %s940 = smul.addr %s939, 8
      %s941 = scalar_lea.vmem %s21, %s940
      %p942 = pneg %p638
      %p943 = pneg %p635
      %s944 = smul.u32 2, %s38
      %p945 = scmp.lt.s32.totalorder %s39, 1
      %s946 = scalar_select %p945, %s39, 1
      %p947 = scmp.lt.s32.totalorder %s944, 1
      %s948 = scalar_select %p947, %s944, 1
      %s949 = smul.addr %s946, 2
      %s950 = sadd.s32 %s948, %s949
      %s951 = smul.addr %s950, 8
      %s952 = scalar_lea.vmem %s22, %s951
      %s953 = smul.u32 2, %s38
      %p954 = scmp.lt.s32.totalorder %s953, 1
      %s955 = scalar_select %p954, %s953, 1
      %s956 = smul.addr %s955, 8
      %s957 = scalar_lea.vmem %s0, %s956
      %s958 = smul.u32 2, %s38
      %s959 = smul.u32 2, %s38
      %p960 = scmp.lt.s32.totalorder %s959, 1
      %s961 = scalar_select %p960, %s959, 1
      %s962 = smul.addr %s961, 8
      %s963 = scalar_lea.vmem %s1, %s962
      %s964 = smul.u32 2, %s38
      %s965 = smul.u32 2, %s38
      %p966 = scmp.lt.s32.totalorder %s965, 1
      %s967 = scalar_select %p966, %s965, 1
      %s968 = smul.addr %s967, 8
      %s969 = scalar_lea.vmem %s2, %s968
      %s970 = smul.u32 2, %s38
      %s971 = smul.u32 2, %s38
      %p972 = scmp.lt.s32.totalorder %s971, 1
      %s973 = scalar_select %p972, %s971, 1
      %s974 = scalar_lea.vmem %s4, %s973
      %s975 = smul.u32 2, %s38
      %p976 = scmp.lt.s32.totalorder %s39, 1
      %s977 = scalar_select %p976, %s39, 1
      %s978 = smul.addr %s977, 4
      %s979 = smul.addr %s978, 4
      %s980 = scalar_lea.vmem %s5, %s979
      %p981 = scmp.lt.s32.totalorder %s39, 1
      %s982 = scalar_select %p981, %s39, 1
      %s983 = smul.addr %s982, 4
      %s984 = smul.addr %s983, 4
      %s985 = scalar_lea.vmem %s6, %s984
      %p986 = scmp.lt.s32.totalorder %s39, 1
      %s987 = scalar_select %p986, %s39, 1
      %s988 = smul.addr %s987, 4
      %s989 = smul.addr %s988, 4
      %s990 = scalar_lea.vmem %s7, %s989
      %p991 = scmp.lt.s32.totalorder %s39, 1
      %s992 = scalar_select %p991, %s39, 1
      %s993 = scalar_lea.vmem %s8, %s992
      %p994 = scmp.lt.s32.totalorder %s39, 1
      %s995 = scalar_select %p994, %s39, 1
      %s996 = scalar_lea.vmem %s9, %s995
      %p997 = scmp.lt.s32.totalorder %s39, 1
      %s998 = scalar_select %p997, %s39, 1
      %s999 = scalar_lea.vmem %s10, %s998
      %p1000 = scmp.lt.s32.totalorder %s39, 1
      %s1001 = scalar_select %p1000, %s39, 1
      %s1002 = smul.addr %s1001, 4
      %s1003 = smul.addr %s1002, 4
      %s1004 = scalar_lea.vmem %s11, %s1003
      %p1005 = scmp.lt.s32.totalorder %s39, 1
      %s1006 = scalar_select %p1005, %s39, 1
      %s1007 = scalar_lea.vmem %s12, %s1006
      %p1008 = scmp.lt.s32.totalorder %s39, 1
      %s1009 = scalar_select %p1008, %s39, 1
      %s1010 = smul.addr %s1009, 4
      %s1011 = smul.addr %s1010, 4
      %s1012 = scalar_lea.vmem %s13, %s1011
      %p1013 = scmp.lt.s32.totalorder %s39, 1
      %s1014 = scalar_select %p1013, %s39, 1
      %s1015 = scalar_lea.vmem %s14, %s1014
      %p1016 = scmp.lt.s32.totalorder %s39, 1
      %s1017 = scalar_select %p1016, %s39, 1
      %s1018 = smul.addr %s1017, 8
      %s1019 = smul.addr %s1018, 4
      %s1020 = scalar_lea.vmem %s15, %s1019
      %p1021 = scmp.lt.s32.totalorder %s39, 1
      %s1022 = scalar_select %p1021, %s39, 1
      %s1023 = scalar_lea.vmem %s16, %s1022
      %p1024 = scmp.lt.s32.totalorder %s39, 1
      %s1025 = scalar_select %p1024, %s39, 1
      %s1026 = scalar_lea.vmem %s17, %s1025
      %p1027 = scmp.lt.s32.totalorder %s39, 1
      %s1028 = scalar_select %p1027, %s39, 1
      %s1029 = scalar_lea.vmem %s18, %s1028
      %p1030 = scmp.lt.s32.totalorder %s39, 1
      %s1031 = scalar_select %p1030, %s39, 1
      %s1032 = scalar_lea.vmem %s19, %s1031
      %p1033 = scmp.lt.s32.totalorder %s39, 1
      %s1034 = scalar_select %p1033, %s39, 1
      %s1035 = scalar_lea.vmem %s20, %s1034
      %s1036 = smul.u32 2, %s38
      %p1037 = scmp.lt.s32.totalorder %s39, 1
      %s1038 = scalar_select %p1037, %s39, 1
      %p1039 = scmp.lt.s32.totalorder %s1036, 1
      %s1040 = scalar_select %p1039, %s1036, 1
      %s1041 = smul.addr %s1038, 2
      %s1042 = sadd.s32 %s1040, %s1041
      %s1043 = smul.addr %s1042, 8
      %s1044 = scalar_lea.vmem %s21, %s1043
      %s1045 = smul.u32 2, %s38
      %s1046 = smul.u32 2, %s38
      %p1047 = scmp.lt.s32.totalorder %s39, 1
      %s1048 = scalar_select %p1047, %s39, 1
      %p1049 = scmp.lt.s32.totalorder %s1046, 1
      %s1050 = scalar_select %p1049, %s1046, 1
      %s1051 = smul.addr %s1048, 2
      %s1052 = sadd.s32 %s1050, %s1051
      %s1053 = smul.addr %s1052, 8
      %s1054 = scalar_lea.vmem %s22, %s1053
      %s1055 = smul.u32 2, %s38
      %p1057 = scmp.eq.s32.totalorder %s39, 0
      // Predicated region
      $region105: #{cx_encoder_forward.1} parent=103 // pred_check
        %p1058 = pneg %p1057
      $region106: #{cx_encoder_forward.1} parent=103 // pred_check_branch
        %1060 = sbr.rel (%p1058) target = $region108
      $region107: #{cx_encoder_forward.1} parent=103 // pred_region
        %v1061 = vld [vmem:[%s957] sm:$0xff]
        %v1062 = vld [vmem:[%s957 + $0x8] sm:$0xff]
        %vm1063 = vcmask 261120
        %1064 = vst.msk [vmem:[#allocation2] sm:$0xff] %vm1063, %v1061
        %1065 = vst.msk [vmem:[#allocation2 + $0x8] sm:$0xff] %vm1063, %v1062
      $region108: #{cx_encoder_forward.1} parent=103 // pred_fallthru
        _
      %v1066 = vld [vmem:[#allocation2] sm:$0xff]
      %v1067 = vld [vmem:[#allocation2 + $0x8] sm:$0xff]
      %v1068 = vld [vmem:[%s969] sm:$0xff]
      %v1069 = vld [vmem:[%s969 + $0x8] sm:$0xff]
      %v1070 = vadd.f32 %v1066, %v1068
      %v1071 = vadd.f32 %v1067, %v1069
      %v1072 = vld [vmem:[%s963] sm:$0xff]
      %v1073 = vld [vmem:[%s963 + $0x8] sm:$0xff]
      %v1074 = vld [vmem:[%s3] sm:$0xff]
      %v1075 = vld [vmem:[%s974] sm:$0x1]
      %v1076 = vld [vmem:[%s974 + $0x1] sm:$0x1]
      %v1079 = vperm.slane %v1075, 0
      %v1080 = vperm.slane %v1076, 0
      %v1083 = vadd.f32 %v1074, %v1079
      %v1084 = vadd.f32 %v1074, %v1080
      %v1085 = vld [vmem:[%s980] sm:$0xf]
      %v1086 = vld [vmem:[%s980 + $0x4] sm:$0xf]
      %v1087 = vld [vmem:[%s980 + $0x8] sm:$0xf]
      %v1088 = vld [vmem:[%s980 + $0xc] sm:$0xf]
      %v1089 = vld [vmem:[%s993] sm:$0x1]
      %v1090 = vpack.c.bf16 %v1071, %v1070
      %v1092 = vperm.slane %v1089, 0
      %v1098 = vunpack.c.l.b16 %v1085
      %v1099 = vunpack.c.l.b16 %v1086
      %v1100 = vunpack.c.l.b16 %v1087
      %v1101 = vunpack.c.l.b16 %v1088
      %v1102 = vpack.c.b16 %v1099, %v1098
      %v1103 = vpack.c.b16 %v1101, %v1100
      %vm1106 = vcmask 261120
      %v1108 = vsel %vm1106, %v1090, 0
      %1110 = vmatpush.bf16.msra.mxu0 0
      %1111 = vmatpush.bf16.msra.mxu0 0
      %1112 = vmatpush.bf16.msra.mxu0 0
      %1113 = vmatpush.bf16.msra.mxu0 0
      %1114 = vmatpush.bf16.msra.mxu0 0
      %1115 = vmatpush.bf16.msra.mxu0 0
      %1116 = vmatpush.bf16.msra.mxu0 %v1103
      %1117 = vmatpush.bf16.msra.mxu0 %v1102
      %1118 = vmatmul.bf16.gmra.mxu0 %v1108
      %v1119 = vpop.f32.mrf.mxu0
      %v1120 = vadd.f32 %v1092, %v1119
      %v1121 = vpop.f32.mrf.mxu0
      %v1122 = vadd.f32 %v1092, %v1121
      %1123 = vdwg.mxu0
      %v1124 = vld [vmem:[%s985] sm:$0xf]
      %v1125 = vld [vmem:[%s985 + $0x4] sm:$0xf]
      %v1126 = vld [vmem:[%s985 + $0x8] sm:$0xf]
      %v1127 = vld [vmem:[%s985 + $0xc] sm:$0xf]
      %v1128 = vld [vmem:[%s996] sm:$0x1]
      %v1129 = vpack.c.bf16 %v1073, %v1072
      %v1131 = vperm.slane %v1128, 0
      %v1137 = vunpack.c.l.b16 %v1124
      %v1138 = vunpack.c.l.b16 %v1125
      %v1139 = vunpack.c.l.b16 %v1126
      %v1140 = vunpack.c.l.b16 %v1127
      %v1141 = vpack.c.b16 %v1138, %v1137
      %v1142 = vpack.c.b16 %v1140, %v1139
      %v1146 = vsel %vm1106, %v1129, 0
      %1148 = vmatpush.bf16.msra.mxu0 0
      %1149 = vmatpush.bf16.msra.mxu0 0
      %1150 = vmatpush.bf16.msra.mxu0 0
      %1151 = vmatpush.bf16.msra.mxu0 0
      %1152 = vmatpush.bf16.msra.mxu0 0
      %1153 = vmatpush.bf16.msra.mxu0 0
      %1154 = vmatpush.bf16.msra.mxu0 %v1142
      %1155 = vmatpush.bf16.msra.mxu0 %v1141
      %1156 = vmatmul.bf16.gmra.mxu0 %v1146
      %v1157 = vpop.f32.mrf.mxu0
      %v1158 = vadd.f32 %v1131, %v1157
      %v1159 = vpop.f32.mrf.mxu0
      %v1160 = vadd.f32 %v1131, %v1159
      %1161 = vdwg.mxu0
      %v1162 = vld [vmem:[%s990] sm:$0xf]
      %v1163 = vld [vmem:[%s990 + $0x4] sm:$0xf]
      %v1164 = vld [vmem:[%s990 + $0x8] sm:$0xf]
      %v1165 = vld [vmem:[%s990 + $0xc] sm:$0xf]
      %v1166 = vld [vmem:[%s999] sm:$0x1]
      %v1168 = vperm.slane %v1166, 0
      %v1174 = vunpack.c.l.b16 %v1162
      %v1175 = vunpack.c.l.b16 %v1163
      %v1176 = vunpack.c.l.b16 %v1164
      %v1177 = vunpack.c.l.b16 %v1165
      %v1178 = vpack.c.b16 %v1175, %v1174
      %v1179 = vpack.c.b16 %v1177, %v1176
      %1182 = vmatpush.bf16.msra.mxu0 0
      %1183 = vmatpush.bf16.msra.mxu0 0
      %1184 = vmatpush.bf16.msra.mxu0 0
      %1185 = vmatpush.bf16.msra.mxu0 0
      %1186 = vmatpush.bf16.msra.mxu0 0
      %1187 = vmatpush.bf16.msra.mxu0 0
      %1188 = vmatpush.bf16.msra.mxu0 %v1179
      %1189 = vmatpush.bf16.msra.mxu0 %v1178
      %1190 = vmatmul.bf16.gmra.mxu0 %v1146
      %v1191 = vpop.f32.mrf.mxu0
      %v1192 = vadd.f32 %v1168, %v1191
      %v1193 = vpop.f32.mrf.mxu0
      %v1194 = vadd.f32 %v1168, %v1193
      %1195 = vdwg.mxu0
      %v1196 = vpack.c.bf16 %v1120, %v1120
      %v1197 = vpack.c.bf16 %v1122, %v1122
      %v1198 = vpack.c.bf16 %v1158, %v1158
      %v1199 = vpack.c.bf16 %v1160, %v1160
      %v1200 = vpack.c.bf16 %v1192, %v1192
      %v1201 = vpack.c.bf16 %v1194, %v1194
      %vm1202 = vcmask 64512
      %v1204 = vsel %vm1202, %v1196, 0
      %v1207 = vsel %vm1202, %v1198, 0
      %1209 = vmatpush.bf16.xpose.msra.mxu0 0
      %1210 = vmatpush.bf16.xpose.msra.mxu0 0
      %1211 = vmatpush.bf16.xpose.msra.mxu0 0
      %1212 = vmatpush.bf16.xpose.msra.mxu0 0
      %1213 = vmatpush.bf16.xpose.msra.mxu0 0
      %1214 = vmatpush.bf16.xpose.msra.mxu0 0
      %1215 = vmatpush.bf16.xpose.msra.mxu0 0
      %1216 = vmatpush.bf16.xpose.msra.mxu0 %v1207
      %1217 = vmatmul.bf16.gmra.mxu0 %v1204
      %v1218 = vpop.f32.mrf.mxu0
      %v1219 = vadd.f32 %v1083, %v1218
      %v1220 = vpop.f32.mrf.mxu0
      %1221 = vdwg.mxu0
      %v1223 = vsel %vm1202, %v1197, 0
      %v1226 = vsel %vm1202, %v1199, 0
      %1228 = vmatpush.bf16.xpose.msra.mxu0 0
      %1229 = vmatpush.bf16.xpose.msra.mxu0 0
      %1230 = vmatpush.bf16.xpose.msra.mxu0 0
      %1231 = vmatpush.bf16.xpose.msra.mxu0 0
      %1232 = vmatpush.bf16.xpose.msra.mxu0 0
      %1233 = vmatpush.bf16.xpose.msra.mxu0 0
      %1234 = vmatpush.bf16.xpose.msra.mxu0 0
      %1235 = vmatpush.bf16.xpose.msra.mxu0 %v1226
      %1236 = vmatmul.bf16.gmra.mxu0 %v1223
      %v1237 = vpop.f32.mrf.mxu0
      %v1238 = vadd.f32 %v1084, %v1237
      %v1239 = vpop.f32.mrf.mxu0
      %1240 = vdwg.mxu0
      %v1241 = vsel %vm1202, %v1219, -inf
      %1242 = vmax.xlane.f32.xlu0 %v1241
      %v1243 = vpop.xlane.xlu0 %1242
      %v1244 = vsel %vm1202, %v1238, -inf
      %1245 = vmax.xlane.f32.xlu0 %v1244
      %v1246 = vpop.xlane.xlu0 %1245
      %v1247 = vsub.f32 %v1219, %v1243
      %v1248 = vsub.f32 %v1238, %v1246
      %v1249 = vmul.f32 %v1247, 1.442695
      %v1250 = vpow.pop %v1249
      %v1251 = vmul.f32 %v1248, 1.442695
      %v1252 = vpow.pop %v1251
      %v1253 = vsel %vm1202, %v1250, 0.0
      %1254 = vadd.xlane.f32.xlu0 %v1253
      %v1255 = vpop.xlane.xlu0 %1254
      %v1256 = vsel %vm1202, %v1252, 0.0
      %1257 = vadd.xlane.f32.xlu0 %v1256
      %v1258 = vpop.xlane.xlu0 %1257
      %v1259 = vrcp.pop %v1255
      %v1260 = vrcp.pop %v1258
      %v1261 = vmul.f32 %v1250, %v1259
      %v1262 = vmul.f32 %v1252, %v1260
      %v1263 = vadd.f32 %v1261, 0.0
      %v1264 = vadd.f32 %v1262, 0.0
      %v1265 = vpack.c.bf16 %v1261, %v1261
      %v1266 = vpack.c.bf16 %v1262, %v1262
      %v1268 = vsel %vm1202, %v1265, 0
      %vm1270 = vcmask 1043456
      %v1272 = vsel %vm1270, %v1200, 0
      %1274 = vmatpush.bf16.msra.mxu0 0
      %1275 = vmatpush.bf16.msra.mxu0 0
      %1276 = vmatpush.bf16.msra.mxu0 0
      %1277 = vmatpush.bf16.msra.mxu0 0
      %1278 = vmatpush.bf16.msra.mxu0 0
      %1279 = vmatpush.bf16.msra.mxu0 0
      %1280 = vmatpush.bf16.msra.mxu0 0
      %1281 = vmatpush.bf16.msra.mxu0 %v1272
      %1282 = vmatmul.bf16.gmra.mxu0 %v1268
      %v1283 = vpop.f32.mrf.mxu0
      %v1284 = vadd.f32 0.0, %v1283
      %v1285 = vpop.f32.mrf.mxu0
      %1286 = vdwg.mxu0
      %v1288 = vsel %vm1202, %v1266, 0
      %v1291 = vsel %vm1270, %v1201, 0
      %1293 = vmatpush.bf16.msra.mxu0 0
      %1294 = vmatpush.bf16.msra.mxu0 0
      %1295 = vmatpush.bf16.msra.mxu0 0
      %1296 = vmatpush.bf16.msra.mxu0 0
      %1297 = vmatpush.bf16.msra.mxu0 0
      %1298 = vmatpush.bf16.msra.mxu0 0
      %1299 = vmatpush.bf16.msra.mxu0 0
      %1300 = vmatpush.bf16.msra.mxu0 %v1291
      %1301 = vmatmul.bf16.gmra.mxu0 %v1288
      %v1302 = vpop.f32.mrf.mxu0
      %v1303 = vadd.f32 0.0, %v1302
      %v1304 = vpop.f32.mrf.mxu0
      %1305 = vdwg.mxu0
      %v1307 = vunpack.c.l.b16 %v1196
      %v1308 = vpack.c.b16 %v1307, %v1307
      %1309 = vrot.lane.b32.xlu0 %v1308, 120
      %v1310 = vpop.permute.xlu0 %1309
      %v1312 = vunpack.c.l.b16 %v1198
      %v1313 = vpack.c.b16 %v1312, %v1312
      %1314 = vrot.lane.b32.xlu0 %v1313, 120
      %v1315 = vpop.permute.xlu0 %1314
      %v1317 = vsel %vm1202, %v1310, 0
      %v1320 = vsel %vm1202, %v1315, 0
      %1322 = vmatpush.bf16.xpose.msra.mxu0 0
      %1323 = vmatpush.bf16.xpose.msra.mxu0 0
      %1324 = vmatpush.bf16.xpose.msra.mxu0 0
      %1325 = vmatpush.bf16.xpose.msra.mxu0 0
      %1326 = vmatpush.bf16.xpose.msra.mxu0 0
      %1327 = vmatpush.bf16.xpose.msra.mxu0 0
      %1328 = vmatpush.bf16.xpose.msra.mxu0 0
      %1329 = vmatpush.bf16.xpose.msra.mxu0 %v1320
      %1330 = vmatmul.bf16.gmra.mxu0 %v1317
      %v1331 = vpop.f32.mrf.mxu0
      %v1332 = vadd.f32 %v1083, %v1331
      %v1333 = vpop.f32.mrf.mxu0
      %1334 = vdwg.mxu0
      %v1336 = vunpack.c.l.b16 %v1197
      %v1337 = vpack.c.b16 %v1336, %v1336
      %1338 = vrot.lane.b32.xlu0 %v1337, 120
      %v1339 = vpop.permute.xlu0 %1338
      %v1341 = vunpack.c.l.b16 %v1199
      %v1342 = vpack.c.b16 %v1341, %v1341
      %1343 = vrot.lane.b32.xlu0 %v1342, 120
      %v1344 = vpop.permute.xlu0 %1343
      %v1346 = vsel %vm1202, %v1339, 0
      %v1349 = vsel %vm1202, %v1344, 0
      %1351 = vmatpush.bf16.xpose.msra.mxu0 0
      %1352 = vmatpush.bf16.xpose.msra.mxu0 0
      %1353 = vmatpush.bf16.xpose.msra.mxu0 0
      %1354 = vmatpush.bf16.xpose.msra.mxu0 0
      %1355 = vmatpush.bf16.xpose.msra.mxu0 0
      %1356 = vmatpush.bf16.xpose.msra.mxu0 0
      %1357 = vmatpush.bf16.xpose.msra.mxu0 0
      %1358 = vmatpush.bf16.xpose.msra.mxu0 %v1349
      %1359 = vmatmul.bf16.gmra.mxu0 %v1346
      %v1360 = vpop.f32.mrf.mxu0
      %v1361 = vadd.f32 %v1084, %v1360
      %v1362 = vpop.f32.mrf.mxu0
      %1363 = vdwg.mxu0
      %v1364 = vsel %vm1202, %v1332, -inf
      %1365 = vmax.xlane.f32.xlu0 %v1364
      %v1366 = vpop.xlane.xlu0 %1365
      %v1367 = vsel %vm1202, %v1361, -inf
      %1368 = vmax.xlane.f32.xlu0 %v1367
      %v1369 = vpop.xlane.xlu0 %1368
      %v1370 = vsub.f32 %v1332, %v1366
      %v1371 = vsub.f32 %v1361, %v1369
      %v1372 = vmul.f32 %v1370, 1.442695
      %v1373 = vpow.pop %v1372
      %v1374 = vmul.f32 %v1371, 1.442695
      %v1375 = vpow.pop %v1374
      %v1376 = vsel %vm1202, %v1373, 0.0
      %1377 = vadd.xlane.f32.xlu0 %v1376
      %v1378 = vpop.xlane.xlu0 %1377
      %v1379 = vsel %vm1202, %v1375, 0.0
      %1380 = vadd.xlane.f32.xlu0 %v1379
      %v1381 = vpop.xlane.xlu0 %1380
      %v1382 = vrcp.pop %v1378
      %v1383 = vrcp.pop %v1381
      %v1384 = vmul.f32 %v1373, %v1382
      %v1385 = vmul.f32 %v1375, %v1383
      %v1386 = vadd.f32 %v1263, %v1384
      %v1387 = vadd.f32 %v1264, %v1385
      %v1388 = vpack.c.bf16 %v1384, %v1384
      %v1389 = vpack.c.bf16 %v1385, %v1385
      %v1391 = vunpack.c.l.b16 %v1200
      %v1392 = vpack.c.b16 %v1391, %v1391
      %1393 = vrot.lane.b32.xlu0 %v1392, 120
      %v1394 = vpop.permute.xlu0 %1393
      %v1396 = vsel %vm1202, %v1388, 0
      %v1399 = vsel %vm1270, %v1394, 0
      %1401 = vmatpush.bf16.msra.mxu0 0
      %1402 = vmatpush.bf16.msra.mxu0 0
      %1403 = vmatpush.bf16.msra.mxu0 0
      %1404 = vmatpush.bf16.msra.mxu0 0
      %1405 = vmatpush.bf16.msra.mxu0 0
      %1406 = vmatpush.bf16.msra.mxu0 0
      %1407 = vmatpush.bf16.msra.mxu0 0
      %1408 = vmatpush.bf16.msra.mxu0 %v1399
      %1409 = vmatmul.bf16.gmra.mxu0 %v1396
      %v1410 = vpop.f32.mrf.mxu0
      %v1411 = vadd.f32 0.0, %v1410
      %v1412 = vpop.f32.mrf.mxu0
      %1413 = vdwg.mxu0
      %v1415 = vunpack.c.l.b16 %v1201
      %v1416 = vpack.c.b16 %v1415, %v1415
      %1417 = vrot.lane.b32.xlu0 %v1416, 120
      %v1418 = vpop.permute.xlu0 %1417
      %v1420 = vsel %vm1202, %v1389, 0
      %v1423 = vsel %vm1270, %v1418, 0
      %1425 = vmatpush.bf16.msra.mxu0 0
      %1426 = vmatpush.bf16.msra.mxu0 0
      %1427 = vmatpush.bf16.msra.mxu0 0
      %1428 = vmatpush.bf16.msra.mxu0 0
      %1429 = vmatpush.bf16.msra.mxu0 0
      %1430 = vmatpush.bf16.msra.mxu0 0
      %1431 = vmatpush.bf16.msra.mxu0 0
      %1432 = vmatpush.bf16.msra.mxu0 %v1423
      %1433 = vmatmul.bf16.gmra.mxu0 %v1420
      %v1434 = vpop.f32.mrf.mxu0
      %v1435 = vadd.f32 0.0, %v1434
      %v1436 = vpop.f32.mrf.mxu0
      %1437 = vdwg.mxu0
      %1438 = vrot.lane.b32.xlu0 %v1308, 112
      %v1439 = vpop.permute.xlu0 %1438
      %1440 = vrot.lane.b32.xlu0 %v1313, 112
      %v1441 = vpop.permute.xlu0 %1440
      %v1443 = vsel %vm1202, %v1439, 0
      %v1446 = vsel %vm1202, %v1441, 0
      %1448 = vmatpush.bf16.xpose.msra.mxu0 0
      %1449 = vmatpush.bf16.xpose.msra.mxu0 0
      %1450 = vmatpush.bf16.xpose.msra.mxu0 0
      %1451 = vmatpush.bf16.xpose.msra.mxu0 0
      %1452 = vmatpush.bf16.xpose.msra.mxu0 0
      %1453 = vmatpush.bf16.xpose.msra.mxu0 0
      %1454 = vmatpush.bf16.xpose.msra.mxu0 0
      %1455 = vmatpush.bf16.xpose.msra.mxu0 %v1446
      %1456 = vmatmul.bf16.gmra.mxu0 %v1443
      %v1457 = vpop.f32.mrf.mxu0
      %v1458 = vadd.f32 %v1083, %v1457
      %v1459 = vpop.f32.mrf.mxu0
      %1460 = vdwg.mxu0
      %1461 = vrot.lane.b32.xlu0 %v1337, 112
      %v1462 = vpop.permute.xlu0 %1461
      %1463 = vrot.lane.b32.xlu0 %v1342, 112
      %v1464 = vpop.permute.xlu0 %1463
      %v1466 = vsel %vm1202, %v1462, 0
      %v1469 = vsel %vm1202, %v1464, 0
      %1471 = vmatpush.bf16.xpose.msra.mxu0 0
      %1472 = vmatpush.bf16.xpose.msra.mxu0 0
      %1473 = vmatpush.bf16.xpose.msra.mxu0 0
      %1474 = vmatpush.bf16.xpose.msra.mxu0 0
      %1475 = vmatpush.bf16.xpose.msra.mxu0 0
      %1476 = vmatpush.bf16.xpose.msra.mxu0 0
      %1477 = vmatpush.bf16.xpose.msra.mxu0 0
      %1478 = vmatpush.bf16.xpose.msra.mxu0 %v1469
      %1479 = vmatmul.bf16.gmra.mxu0 %v1466
      %v1480 = vpop.f32.mrf.mxu0
      %v1481 = vadd.f32 %v1084, %v1480
      %v1482 = vpop.f32.mrf.mxu0
      %1483 = vdwg.mxu0
      %v1484 = vsel %vm1202, %v1458, -inf
      %1485 = vmax.xlane.f32.xlu0 %v1484
      %v1486 = vpop.xlane.xlu0 %1485
      %v1487 = vsel %vm1202, %v1481, -inf
      %1488 = vmax.xlane.f32.xlu0 %v1487
      %v1489 = vpop.xlane.xlu0 %1488
      %v1490 = vsub.f32 %v1458, %v1486
      %v1491 = vsub.f32 %v1481, %v1489
      %v1492 = vmul.f32 %v1490, 1.442695
      %v1493 = vpow.pop %v1492
      %v1494 = vmul.f32 %v1491, 1.442695
      %v1495 = vpow.pop %v1494
      %v1496 = vsel %vm1202, %v1493, 0.0
      %1497 = vadd.xlane.f32.xlu0 %v1496
      %v1498 = vpop.xlane.xlu0 %1497
      %v1499 = vsel %vm1202, %v1495, 0.0
      %1500 = vadd.xlane.f32.xlu0 %v1499
      %v1501 = vpop.xlane.xlu0 %1500
      %v1502 = vrcp.pop %v1498
      %v1503 = vrcp.pop %v1501
      %v1504 = vmul.f32 %v1493, %v1502
      %v1505 = vmul.f32 %v1495, %v1503
      %v1506 = vadd.f32 %v1386, %v1504
      %v1507 = vadd.f32 %v1387, %v1505
      %v1508 = vpack.c.bf16 %v1504, %v1504
      %v1509 = vpack.c.bf16 %v1505, %v1505
      %1510 = vrot.lane.b32.xlu0 %v1392, 112
      %v1511 = vpop.permute.xlu0 %1510
      %v1513 = vsel %vm1202, %v1508, 0
      %v1516 = vsel %vm1270, %v1511, 0
      %1518 = vmatpush.bf16.msra.mxu0 0
      %1519 = vmatpush.bf16.msra.mxu0 0
      %1520 = vmatpush.bf16.msra.mxu0 0
      %1521 = vmatpush.bf16.msra.mxu0 0
      %1522 = vmatpush.bf16.msra.mxu0 0
      %1523 = vmatpush.bf16.msra.mxu0 0
      %1524 = vmatpush.bf16.msra.mxu0 0
      %1525 = vmatpush.bf16.msra.mxu0 %v1516
      %1526 = vmatmul.bf16.gmra.mxu0 %v1513
      %v1527 = vpop.f32.mrf.mxu0
      %v1528 = vadd.f32 0.0, %v1527
      %v1529 = vpop.f32.mrf.mxu0
      %1530 = vdwg.mxu0
      %1531 = vrot.lane.b32.xlu0 %v1416, 112
      %v1532 = vpop.permute.xlu0 %1531
      %v1534 = vsel %vm1202, %v1509, 0
      %v1537 = vsel %vm1270, %v1532, 0
      %1539 = vmatpush.bf16.msra.mxu0 0
      %1540 = vmatpush.bf16.msra.mxu0 0
      %1541 = vmatpush.bf16.msra.mxu0 0
      %1542 = vmatpush.bf16.msra.mxu0 0
      %1543 = vmatpush.bf16.msra.mxu0 0
      %1544 = vmatpush.bf16.msra.mxu0 0
      %1545 = vmatpush.bf16.msra.mxu0 0
      %1546 = vmatpush.bf16.msra.mxu0 %v1537
      %1547 = vmatmul.bf16.gmra.mxu0 %v1534
      %v1548 = vpop.f32.mrf.mxu0
      %v1549 = vadd.f32 0.0, %v1548
      %v1550 = vpop.f32.mrf.mxu0
      %1551 = vdwg.mxu0
      %1552 = vrot.lane.b32.xlu0 %v1308, 104
      %v1553 = vpop.permute.xlu0 %1552
      %1554 = vrot.lane.b32.xlu0 %v1313, 104
      %v1555 = vpop.permute.xlu0 %1554
      %v1557 = vsel %vm1202, %v1553, 0
      %v1560 = vsel %vm1202, %v1555, 0
      %1562 = vmatpush.bf16.xpose.msra.mxu0 0
      %1563 = vmatpush.bf16.xpose.msra.mxu0 0
      %1564 = vmatpush.bf16.xpose.msra.mxu0 0
      %1565 = vmatpush.bf16.xpose.msra.mxu0 0
      %1566 = vmatpush.bf16.xpose.msra.mxu0 0
      %1567 = vmatpush.bf16.xpose.msra.mxu0 0
      %1568 = vmatpush.bf16.xpose.msra.mxu0 0
      %1569 = vmatpush.bf16.xpose.msra.mxu0 %v1560
      %1570 = vmatmul.bf16.gmra.mxu0 %v1557
      %v1571 = vpop.f32.mrf.mxu0
      %v1572 = vadd.f32 %v1083, %v1571
      %v1573 = vpop.f32.mrf.mxu0
      %1574 = vdwg.mxu0
      %1575 = vrot.lane.b32.xlu0 %v1337, 104
      %v1576 = vpop.permute.xlu0 %1575
      %1577 = vrot.lane.b32.xlu0 %v1342, 104
      %v1578 = vpop.permute.xlu0 %1577
      %v1580 = vsel %vm1202, %v1576, 0
      %v1583 = vsel %vm1202, %v1578, 0
      %1585 = vmatpush.bf16.xpose.msra.mxu0 0
      %1586 = vmatpush.bf16.xpose.msra.mxu0 0
      %1587 = vmatpush.bf16.xpose.msra.mxu0 0
      %1588 = vmatpush.bf16.xpose.msra.mxu0 0
      %1589 = vmatpush.bf16.xpose.msra.mxu0 0
      %1590 = vmatpush.bf16.xpose.msra.mxu0 0
      %1591 = vmatpush.bf16.xpose.msra.mxu0 0
      %1592 = vmatpush.bf16.xpose.msra.mxu0 %v1583
      %1593 = vmatmul.bf16.gmra.mxu0 %v1580
      %v1594 = vpop.f32.mrf.mxu0
      %v1595 = vadd.f32 %v1084, %v1594
      %v1596 = vpop.f32.mrf.mxu0
      %1597 = vdwg.mxu0
      %v1598 = vsel %vm1202, %v1572, -inf
      %1599 = vmax.xlane.f32.xlu0 %v1598
      %v1600 = vpop.xlane.xlu0 %1599
      %v1601 = vsel %vm1202, %v1595, -inf
      %1602 = vmax.xlane.f32.xlu0 %v1601
      %v1603 = vpop.xlane.xlu0 %1602
      %v1604 = vsub.f32 %v1572, %v1600
      %v1605 = vsub.f32 %v1595, %v1603
      %v1606 = vmul.f32 %v1604, 1.442695
      %v1607 = vpow.pop %v1606
      %v1608 = vmul.f32 %v1605, 1.442695
      %v1609 = vpow.pop %v1608
      %v1610 = vsel %vm1202, %v1607, 0.0
      %1611 = vadd.xlane.f32.xlu0 %v1610
      %v1612 = vpop.xlane.xlu0 %1611
      %v1613 = vsel %vm1202, %v1609, 0.0
      %1614 = vadd.xlane.f32.xlu0 %v1613
      %v1615 = vpop.xlane.xlu0 %1614
      %v1616 = vrcp.pop %v1612
      %v1617 = vrcp.pop %v1615
      %v1618 = vmul.f32 %v1607, %v1616
      %v1619 = vmul.f32 %v1609, %v1617
      %v1620 = vadd.f32 %v1506, %v1618
      %v1621 = vadd.f32 %v1507, %v1619
      %v1622 = vpack.c.bf16 %v1618, %v1618
      %v1623 = vpack.c.bf16 %v1619, %v1619
      %1624 = vrot.lane.b32.xlu0 %v1392, 104
      %v1625 = vpop.permute.xlu0 %1624
      %v1627 = vsel %vm1202, %v1622, 0
      %v1630 = vsel %vm1270, %v1625, 0
      %1632 = vmatpush.bf16.msra.mxu0 0
      %1633 = vmatpush.bf16.msra.mxu0 0
      %1634 = vmatpush.bf16.msra.mxu0 0
      %1635 = vmatpush.bf16.msra.mxu0 0
      %1636 = vmatpush.bf16.msra.mxu0 0
      %1637 = vmatpush.bf16.msra.mxu0 0
      %1638 = vmatpush.bf16.msra.mxu0 0
      %1639 = vmatpush.bf16.msra.mxu0 %v1630
      %1640 = vmatmul.bf16.gmra.mxu0 %v1627
      %v1641 = vpop.f32.mrf.mxu0
      %v1642 = vadd.f32 0.0, %v1641
      %v1643 = vpop.f32.mrf.mxu0
      %1644 = vdwg.mxu0
      %1645 = vrot.lane.b32.xlu0 %v1416, 104
      %v1646 = vpop.permute.xlu0 %1645
      %v1648 = vsel %vm1202, %v1623, 0
      %v1651 = vsel %vm1270, %v1646, 0
      %1653 = vmatpush.bf16.msra.mxu0 0
      %1654 = vmatpush.bf16.msra.mxu0 0
      %1655 = vmatpush.bf16.msra.mxu0 0
      %1656 = vmatpush.bf16.msra.mxu0 0
      %1657 = vmatpush.bf16.msra.mxu0 0
      %1658 = vmatpush.bf16.msra.mxu0 0
      %1659 = vmatpush.bf16.msra.mxu0 0
      %1660 = vmatpush.bf16.msra.mxu0 %v1651
      %1661 = vmatmul.bf16.gmra.mxu0 %v1648
      %v1662 = vpop.f32.mrf.mxu0
      %v1663 = vadd.f32 0.0, %v1662
      %v1664 = vpop.f32.mrf.mxu0
      %1665 = vdwg.mxu0
      %v1666 = vmul.f32 %v1620, 0.25
      %v1667 = vmul.f32 %v1621, 0.25
      %1668 = vst.msk [vmem:[%s1054] sm:$0xff] %vm1202, %v1666
      %1669 = vst.msk [vmem:[%s1054 + $0x8] sm:$0xff] %vm1202, %v1667
      %1672 = vrot.lane.b32.xlu0 %v1411, 8
      %v1673 = vpop.permute.xlu0 %1672
      %1674 = vrot.lane.b32.xlu0 %v1435, 8
      %v1675 = vpop.permute.xlu0 %1674
      %1680 = vrot.lane.b32.xlu0 %v1528, 16
      %v1681 = vpop.permute.xlu0 %1680
      %1682 = vrot.lane.b32.xlu0 %v1549, 16
      %v1683 = vpop.permute.xlu0 %1682
      %1688 = vrot.lane.b32.xlu0 %v1642, 24
      %v1689 = vpop.permute.xlu0 %1688
      %1690 = vrot.lane.b32.xlu0 %v1663, 24
      %v1691 = vpop.permute.xlu0 %1690
      %v1694 = vsel %vm1202, %v1284, %v1673
      %v1695 = vsel %vm1202, %v1303, %v1675
      %vm1696 = vcmask 130048
      %v1697 = vsel %vm1696, %v1694, %v1681
      %v1698 = vsel %vm1696, %v1695, %v1683
      %vm1699 = vcmask 195584
      %v1700 = vsel %vm1699, %v1697, %v1689
      %v1701 = vsel %vm1699, %v1698, %v1691
      %v1702 = vld [vmem:[%s1004] sm:$0xf]
      %v1703 = vld [vmem:[%s1004 + $0x4] sm:$0xf]
      %v1704 = vld [vmem:[%s1004 + $0x8] sm:$0xf]
      %v1705 = vld [vmem:[%s1004 + $0xc] sm:$0xf]
      %v1706 = vld [vmem:[%s1007] sm:$0x1]
      %v1707 = vpack.c.bf16 %v1701, %v1700
      %v1709 = vperm.slane %v1706, 0
      %v1715 = vunpack.c.l.b16 %v1702
      %v1716 = vunpack.c.l.b16 %v1703
      %v1717 = vunpack.c.l.b16 %v1704
      %v1718 = vunpack.c.l.b16 %v1705
      %v1719 = vpack.c.b16 %v1716, %v1715
      %v1720 = vpack.c.b16 %v1718, %v1717
      %v1724 = vsel %vm1106, %v1707, 0
      %1726 = vmatpush.bf16.msra.mxu0 0
      %1727 = vmatpush.bf16.msra.mxu0 0
      %1728 = vmatpush.bf16.msra.mxu0 0
      %1729 = vmatpush.bf16.msra.mxu0 0
      %1730 = vmatpush.bf16.msra.mxu0 0
      %1731 = vmatpush.bf16.msra.mxu0 0
      %1732 = vmatpush.bf16.msra.mxu0 %v1720
      %1733 = vmatpush.bf16.msra.mxu0 %v1719
      %1734 = vmatmul.bf16.gmra.mxu0 %v1724
      %v1735 = vpop.f32.mrf.mxu0
      %v1736 = vadd.f32 %v1709, %v1735
      %v1737 = vpop.f32.mrf.mxu0
      %v1738 = vadd.f32 %v1709, %v1737
      %1739 = vdwg.mxu0
      %v1740 = vadd.f32 %v1066, %v1736
      %v1741 = vadd.f32 %v1067, %v1738
      %v1742 = vld [vmem:[%s1026] sm:$0x1]
      %v1743 = vld [vmem:[%s1029] sm:$0x1]
      %v1744 = vsel %vm1106, %v1740, 0.0
      %1745 = vadd.xlane.f32.xlu0 %v1744
      %v1746 = vpop.xlane.xlu0 %1745
      %v1747 = vsel %vm1106, %v1741, 0.0
      %1748 = vadd.xlane.f32.xlu0 %v1747
      %v1749 = vpop.xlane.xlu0 %1748
      %v1750 = vrcp.pop 32.0
      %v1751 = vmul.f32 32.0, %v1750
      %v1752 = vsub.f32 1.0, %v1751
      %v1753 = vmul.f32 %v1750, %v1752
      %v1754 = vadd.f32 %v1750, %v1753
      %vm1755 = vweird.f32 %v1750
      %v1756 = vsel %vm1755, %v1750, %v1754
      %v1757 = vmul.f32 %v1746, %v1756
      %v1758 = vmul.f32 %v1749, %v1756
      %v1759 = vsub.f32 %v1740, %v1757
      %v1760 = vsub.f32 %v1741, %v1758
      %v1761 = vmul.f32 %v1759, %v1759
      %v1762 = vmul.f32 %v1760, %v1760
      %v1763 = vsel %vm1106, %v1761, 0.0
      %1764 = vadd.xlane.f32.xlu0 %v1763
      %v1765 = vpop.xlane.xlu0 %1764
      %v1766 = vsel %vm1106, %v1762, 0.0
      %1767 = vadd.xlane.f32.xlu0 %v1766
      %v1768 = vpop.xlane.xlu0 %1767
      %v1769 = vmul.f32 %v1765, %v1756
      %v1770 = vmul.f32 %v1768, %v1756
      %v1771 = vadd.f32 %v1769, 1e-05
      %v1772 = vadd.f32 %v1770, 1e-05
      %v1773 = vrsqrt.pop %v1771
      %v1774 = vmul.f32 %v1773, %v1771
      %v1775 = vmul.f32 %v1774, %v1773
      %v1776 = vmul.f32 0.5, %v1775
      %v1777 = vsub.f32 1.5, %v1776
      %v1778 = vmul.f32 %v1773, %v1777
      %vm1779 = vweird.f32 %v1771
      %vm1780 = vweird.f32 %v1773
      %vm1781 = vmor %vm1779, %vm1780
      %v1782 = vsel %vm1781, %v1773, %v1778
      %v1783 = vrsqrt.pop %v1772
      %v1784 = vmul.f32 %v1783, %v1772
      %v1785 = vmul.f32 %v1784, %v1783
      %v1786 = vmul.f32 0.5, %v1785
      %v1787 = vsub.f32 1.5, %v1786
      %v1788 = vmul.f32 %v1783, %v1787
      %vm1789 = vweird.f32 %v1772
      %vm1790 = vweird.f32 %v1783
      %vm1791 = vmor %vm1789, %vm1790
      %v1792 = vsel %vm1791, %v1783, %v1788
      %v1793 = vmul.f32 %v1759, %v1782
      %v1794 = vmul.f32 %v1760, %v1792
      %v1796 = vperm.slane %v1742, 0
      %v1798 = vmul.f32 %v1793, %v1796
      %v1799 = vmul.f32 %v1794, %v1796
      %v1801 = vperm.slane %v1743, 0
      %v1803 = vadd.f32 %v1798, %v1801
      %v1804 = vadd.f32 %v1799, %v1801
      %v1805 = vld [vmem:[%s1012] sm:$0xf]
      %v1806 = vld [vmem:[%s1012 + $0x4] sm:$0xf]
      %v1807 = vld [vmem:[%s1012 + $0x8] sm:$0xf]
      %v1808 = vld [vmem:[%s1012 + $0xc] sm:$0xf]
      %v1809 = vld [vmem:[%s1015] sm:$0x1]
      %v1810 = vpack.c.bf16 %v1804, %v1803
      %v1812 = vperm.slane %v1809, 0
      %v1818 = vunpack.c.l.b16 %v1805
      %v1819 = vunpack.c.l.b16 %v1806
      %v1820 = vunpack.c.l.b16 %v1807
      %v1821 = vunpack.c.l.b16 %v1808
      %v1822 = vpack.c.b16 %v1819, %v1818
      %v1823 = vpack.c.b16 %v1821, %v1820
      %v1827 = vsel %vm1106, %v1810, 0
      %1829 = vmatpush.bf16.msra.mxu0 0
      %1830 = vmatpush.bf16.msra.mxu0 0
      %1831 = vmatpush.bf16.msra.mxu0 0
      %1832 = vmatpush.bf16.msra.mxu0 0
      %1833 = vmatpush.bf16.msra.mxu0 0
      %1834 = vmatpush.bf16.msra.mxu0 0
      %1835 = vmatpush.bf16.msra.mxu0 %v1823
      %1836 = vmatpush.bf16.msra.mxu0 %v1822
      %1837 = vmatmul.bf16.gmra.mxu0 %v1827
      %v1838 = vpop.f32.mrf.mxu0
      %v1839 = vadd.f32 %v1812, %v1838
      %v1840 = vpop.f32.mrf.mxu0
      %v1841 = vadd.f32 %v1812, %v1840
      %1842 = vdwg.mxu0
      %v1843 = vmax.f32 %v1839, 0.0
      %v1844 = vmax.f32 %v1841, 0.0
      %v1845 = vld [vmem:[%s1020] sm:$0xf]
      %v1846 = vld [vmem:[%s1020 + $0x4] sm:$0xf]
      %v1847 = vld [vmem:[%s1020 + $0x8] sm:$0xf]
      %v1848 = vld [vmem:[%s1020 + $0xc] sm:$0xf]
      %v1849 = vld [vmem:[%s1020 + $0x10] sm:$0xf]
      %v1850 = vld [vmem:[%s1020 + $0x14] sm:$0xf]
      %v1851 = vld [vmem:[%s1020 + $0x18] sm:$0xf]
      %v1852 = vld [vmem:[%s1020 + $0x1c] sm:$0xf]
      %v1853 = vld [vmem:[%s1023] sm:$0x1]
      %v1854 = vpack.c.bf16 %v1844, %v1843
      %v1856 = vperm.slane %v1853, 0
      %v1866 = vunpack.c.l.b16 %v1845
      %v1867 = vunpack.c.l.b16 %v1846
      %v1868 = vunpack.c.l.b16 %v1847
      %v1869 = vunpack.c.l.b16 %v1848
      %v1870 = vunpack.c.l.b16 %v1849
      %v1871 = vunpack.c.l.b16 %v1850
      %v1872 = vunpack.c.l.b16 %v1851
      %v1873 = vunpack.c.l.b16 %v1852
      %v1874 = vpack.c.b16 %v1867, %v1866
      %v1875 = vpack.c.b16 %v1869, %v1868
      %v1876 = vpack.c.b16 %v1871, %v1870
      %v1877 = vpack.c.b16 %v1873, %v1872
      %vm1882 = vcmask 523264
      %v1884 = vsel %vm1882, %v1854, 0
      %1886 = vmatpush.bf16.msra.mxu0 0
      %1887 = vmatpush.bf16.msra.mxu0 0
      %1888 = vmatpush.bf16.msra.mxu0 0
      %1889 = vmatpush.bf16.msra.mxu0 0
      %1890 = vmatpush.bf16.msra.mxu0 %v1877
      %1891 = vmatpush.bf16.msra.mxu0 %v1876
      %1892 = vmatpush.bf16.msra.mxu0 %v1875
      %1893 = vmatpush.bf16.msra.mxu0 %v1874
      %1894 = vmatmul.bf16.gmra.mxu0 %v1884
      %v1895 = vpop.f32.mrf.mxu0
      %v1896 = vadd.f32 %v1856, %v1895
      %v1897 = vpop.f32.mrf.mxu0
      %v1898 = vadd.f32 %v1856, %v1897
      %1899 = vdwg.mxu0
      %v1900 = vadd.f32 %v1803, %v1896
      %v1901 = vadd.f32 %v1804, %v1898
      %v1902 = vld [vmem:[%s1032] sm:$0x1]
      %v1903 = vld [vmem:[%s1035] sm:$0x1]
      %v1904 = vsel %vm1106, %v1900, 0.0
      %1905 = vadd.xlane.f32.xlu0 %v1904
      %v1906 = vpop.xlane.xlu0 %1905
      %v1907 = vsel %vm1106, %v1901, 0.0
      %1908 = vadd.xlane.f32.xlu0 %v1907
      %v1909 = vpop.xlane.xlu0 %1908
      %v1910 = vmul.f32 %v1906, %v1756
      %v1911 = vmul.f32 %v1909, %v1756
      %v1912 = vsub.f32 %v1900, %v1910
      %v1913 = vsub.f32 %v1901, %v1911
      %v1914 = vmul.f32 %v1912, %v1912
      %v1915 = vmul.f32 %v1913, %v1913
      %v1916 = vsel %vm1106, %v1914, 0.0
      %1917 = vadd.xlane.f32.xlu0 %v1916
      %v1918 = vpop.xlane.xlu0 %1917
      %v1919 = vsel %vm1106, %v1915, 0.0
      %1920 = vadd.xlane.f32.xlu0 %v1919
      %v1921 = vpop.xlane.xlu0 %1920
      %v1922 = vmul.f32 %v1918, %v1756
      %v1923 = vmul.f32 %v1921, %v1756
      %v1924 = vadd.f32 %v1922, 1e-05
      %v1925 = vadd.f32 %v1923, 1e-05
      %v1926 = vrsqrt.pop %v1924
      %v1927 = vmul.f32 %v1926, %v1924
      %v1928 = vmul.f32 %v1927, %v1926
      %v1929 = vmul.f32 0.5, %v1928
      %v1930 = vsub.f32 1.5, %v1929
      %v1931 = vmul.f32 %v1926, %v1930
      %vm1932 = vweird.f32 %v1924
      %vm1933 = vweird.f32 %v1926
      %vm1934 = vmor %vm1932, %vm1933
      %v1935 = vsel %vm1934, %v1926, %v1931
      %v1936 = vrsqrt.pop %v1925
      %v1937 = vmul.f32 %v1936, %v1925
      %v1938 = vmul.f32 %v1937, %v1936
      %v1939 = vmul.f32 0.5, %v1938
      %v1940 = vsub.f32 1.5, %v1939
      %v1941 = vmul.f32 %v1936, %v1940
      %vm1942 = vweird.f32 %v1925
      %vm1943 = vweird.f32 %v1936
      %vm1944 = vmor %vm1942, %vm1943
      %v1945 = vsel %vm1944, %v1936, %v1941
      %v1946 = vmul.f32 %v1912, %v1935
      %v1947 = vmul.f32 %v1913, %v1945
      %v1949 = vperm.slane %v1902, 0
      %v1951 = vmul.f32 %v1946, %v1949
      %v1952 = vmul.f32 %v1947, %v1949
      %v1954 = vperm.slane %v1903, 0
      %v1956 = vadd.f32 %v1951, %v1954
      %v1957 = vadd.f32 %v1952, %v1954
      %1958 = vst.msk [vmem:[#allocation2] sm:$0xff] %vm1106, %v1956
      %1959 = vst.msk [vmem:[#allocation2 + $0x8] sm:$0xff] %vm1106, %v1957
      %1960 = vst.msk [vmem:[%s1044] sm:$0xff] %vm1106, %v1956
      %1961 = vst.msk [vmem:[%s1044 + $0x8] sm:$0xff] %vm1106, %v1957
      %s1962 = smul.u32 2, %s38
      %p1963 = scmp.lt.s32.totalorder %s39, 1
      %s1964 = scalar_select %p1963, %s39, 1
      %p1965 = scmp.lt.s32.totalorder %s1962, 1
      %s1966 = scalar_select %p1965, %s1962, 1
      %s1967 = smul.addr %s1964, 2
      %s1968 = sadd.s32 %s1966, %s1967
      %s1969 = smul.addr %s1968, 8
      %s1970 = scalar_lea.vmem %s21, %s1969
      %s1971 = smul.u32 2, %s38
      %p1972 = scmp.lt.s32.totalorder %s39, 1
      %s1973 = scalar_select %p1972, %s39, 1
      %p1974 = scmp.lt.s32.totalorder %s1971, 1
      %s1975 = scalar_select %p1974, %s1971, 1
      %s1976 = smul.addr %s1973, 2
      %s1977 = sadd.s32 %s1975, %s1976
      %s1978 = smul.addr %s1977, 8
      %s1979 = scalar_lea.vmem %s22, %s1978
      // Predicated region
      $region109: #{cx_encoder_forward.1} parent=103 // pred_check
        %p1980 = pneg %p607
      $region110: #{cx_encoder_forward.1} parent=103 // pred_check_branch
        %1982 = sbr.rel (%p1980) target = $region112
      $region111: #{cx_encoder_forward.1} parent=103 // pred_region
        %s1983 = smul.u32 2, %s38
      $region112: #{cx_encoder_forward.1} parent=103 // pred_fallthru
        _
      // Predicated region
      $region113: #{cx_encoder_forward.1} parent=103 // pred_check
        %p1984 = pneg %p635
      $region114: #{cx_encoder_forward.1} parent=103 // pred_check_branch
        %1986 = sbr.rel (%p1984) target = $region116
      $region115: #{cx_encoder_forward.1} parent=103 // pred_region
        %s1987 = smul.u32 2, %s38
      $region116: #{cx_encoder_forward.1} parent=103 // pred_fallthru
        _
    $region104: #{cx_encoder_forward.1} parent=5 // pred_fallthru
      _
    %p1988 = scmp.le.s32.totalorder 2, %s29
    // Predicated region
    $region117: #{cx_encoder_forward.1} parent=5 // pred_check
      %p1989 = pneg %p1988
    $region118: #{cx_encoder_forward.1} parent=5 // pred_check_branch
      %1991 = sbr.rel (%p1989) target = $region120
    $region119: #{cx_encoder_forward.1} parent=5 // pred_region
      %s1992 = ssub.s32 %s29, 2
      // Predicated region
      $region121: #{cx_encoder_forward.1} parent=119 // pred_check
        %p1993 = pneg %p613
      $region122: #{cx_encoder_forward.1} parent=119 // pred_check_branch
        %1995 = sbr.rel (%p1993) target = $region124
      $region123: #{cx_encoder_forward.1} parent=119 // pred_region
        %s1996 = smul.u32 2, %s40
        %p1997 = scmp.lt.s32.totalorder %s41, 1
        %s1998 = scalar_select %p1997, %s41, 1
        %p1999 = scmp.lt.s32.totalorder %s1996, 1
        %s2000 = scalar_select %p1999, %s1996, 1
        %s2001 = smul.addr %s1998, 2
        %s2002 = sadd.s32 %s2000, %s2001
        %s2003 = smul.addr %s2002, 8
        %s2004 = scalar_lea.vmem %s21, %s2003
      $region124: #{cx_encoder_forward.1} parent=119 // pred_fallthru
        _
      // Predicated region
      $region125: #{cx_encoder_forward.1} parent=119 // pred_check
        %p2005 = pneg %p641
      $region126: #{cx_encoder_forward.1} parent=119 // pred_check_branch
        %2007 = sbr.rel (%p2005) target = $region128
      $region127: #{cx_encoder_forward.1} parent=119 // pred_region
        %s2008 = smul.u32 2, %s40
        %p2009 = scmp.lt.s32.totalorder %s41, 1
        %s2010 = scalar_select %p2009, %s41, 1
        %p2011 = scmp.lt.s32.totalorder %s2008, 1
        %s2012 = scalar_select %p2011, %s2008, 1
        %s2013 = smul.addr %s2010, 2
        %s2014 = sadd.s32 %s2012, %s2013
        %s2015 = smul.addr %s2014, 8
        %s2016 = scalar_lea.vmem %s22, %s2015
      $region128: #{cx_encoder_forward.1} parent=119 // pred_fallthru
        _
    $region120: #{cx_encoder_forward.1} parent=5 // pred_fallthru
      _
  $region6: #{cx_encoder_forward.1} parent=0 // loop_footer
    %s33 = sadd.s32 1, %s29
  $region7: #{cx_encoder_forward.1} parent=0 // loop_footer_branch
    %28 = sbr.rel target = $region3
  $region8: #{cx_encoder_forward.1} parent=0 // loop_exit
    _

</llo_original>
